<compile_context>
chip_gen: v7x
topology: tpu7x:2x2x1
jax: 0.10.0
libtpu: 0.0.40
codegen_flags: <defaults>
</compile_context>

<pallas_src>
import jax
import jax.numpy as jnp
from jax.experimental import pallas as pl
from jax.experimental.pallas import tpu as pltpu


def graph_operate(x, weight, bias, adj):
    """x: (b, k, node_n, in_d); weight: (J, in_d, out_d); bias: (J, out_d);
    adj: (J, node_n, node_n). Returns (b, k*J, node_n, out_d)."""
    b, k, node_n, in_d = x.shape
    J, _, out_d = weight.shape
    BK = b * k

    # Layout plumbing outside the kernel (free, contiguous reshapes).
    x2d = x.reshape(BK * node_n, in_d)     # rows indexed by (bk, w)
    bias3 = bias.reshape(J, 1, out_d)

    def kernel(x_ref, w_ref, b_ref, adj_ref, o_ref):
        # x_ref  : (BK*node_n, in_d)    -- whole batch, same block for every j
        # w_ref  : (1, in_d, out_d)     -- weight[j]
        # b_ref  : (1, 1, out_d)        -- bias[j]
        # adj_ref: (1, node_n, node_n)  -- adj[j]
        # o_ref  : (BK, 1, node_n, out_d)
        #
        # Feature transform, batched over all BK*node_n rows: one MXU matmul
        # (384, in_d) @ (in_d, out_d) with f32 accumulation, plus bias.
        support = jnp.dot(x_ref[...], w_ref[0],
                          preferred_element_type=jnp.float32) + b_ref[0]
        support = support.reshape(BK, node_n, out_d)        # (bk, w, f)

        # Graph aggregation over the node axis, batched over bk:
        # out[bk, v, f] = sum_w adj[j, v, w] * support[bk, w, f]
        adj_b = jnp.broadcast_to(adj_ref[0], (BK, node_n, node_n))
        out = jnp.einsum('bvw,bwf->bvf', adj_b, support,
                         preferred_element_type=jnp.float32)

        o_ref[...] = out.reshape(BK, 1, node_n, out_d).astype(o_ref.dtype)

    out_flat = pl.pallas_call(
        kernel,
        out_shape=jax.ShapeDtypeStruct((BK, J, node_n, out_d), x.dtype),
        grid_spec=pltpu.PrefetchScalarGridSpec(
            num_scalar_prefetch=0,
            grid=(J,),
            in_specs=[
                pl.BlockSpec((BK * node_n, in_d), lambda j: (0, 0)),
                pl.BlockSpec((1, in_d, out_d), lambda j: (j, 0, 0)),
                pl.BlockSpec((1, 1, out_d), lambda j: (j, 0, 0)),
                pl.BlockSpec((1, node_n, node_n), lambda j: (j, 0, 0)),
            ],
            out_specs=pl.BlockSpec(
                (BK, 1, node_n, out_d), lambda j: (0, j, 0, 0)
            ),
        ),
        compiler_params=pltpu.CompilerParams(
            dimension_semantics=("parallel",)
        ),
    )(x2d, weight, bias3, adj)

    # (BK, J, node_n, out_d) -> (b, k*J, node_n, out_d): pure reshape, no copy.
    return out_flat.reshape(b, k * J, node_n, out_d)


def graph_operate_ref(x, weight, bias, adj):
    """Pure-JAX reference mirroring the PyTorch forward exactly."""
    support = jnp.einsum('bkwd,jdf->bkwjf', x, weight)
    support = support + bias              # bias (J, out_d) broadcasts on last two dims
    support = jnp.swapaxes(support, 2, 3)  # (b, k, J, w, f)
    b, k, j, v, d = support.shape
    output = jnp.einsum('jvw,bkjwf->bkjvf', adj, support)
    return output.reshape(b, -1, v, d)


if __name__ == "__main__":
    # Small shapes consistent with the module: node_n nodes, in_d -> out_d, J hops.
    b, k = 2, 4
    node_n = 48
    in_d, out_d = 32, 32
    J = 2

    key = jax.random.PRNGKey(0)
    kx, kw, kb, ka = jax.random.split(key, 4)

    # Deterministic "xavier"-style init (synthetic weights, no checkpoint load).
    xav_std = (2.0 / (in_d + out_d)) ** 0.5
    bound = 1.0 / (in_d * out_d) ** 0.5
    weight = xav_std * jax.random.normal(kw, (J, in_d, out_d), dtype=jnp.float32)
    bias = jax.random.uniform(kb, (J, out_d), minval=-bound, maxval=bound,
                              dtype=jnp.float32)
    x = jax.random.normal(kx, (b, k, node_n, in_d), dtype=jnp.float32)
    adj = jax.random.normal(ka, (J, node_n, node_n), dtype=jnp.float32)

    graph_operate_jit = jax.jit(graph_operate)
    out = jax.block_until_ready(graph_operate_jit(x, weight, bias, adj))
    ref = graph_operate_ref(x, weight, bias, adj)

    assert out.shape == (b, k * J, node_n, out_d), out.shape
    assert jnp.allclose(out, ref, atol=1e-3, rtol=1e-3), "mismatch vs reference"
    print("KERNEL_OK")
</pallas_src>

<mosaic_0001>
module attributes {stable_mosaic.version = 11 : i64} {
  func.func @kernel(%arg0: i32, %arg1: memref<384x32xf32, #tpu.memory_space<vmem>>, %arg2: memref<1x32x32xf32, #tpu.memory_space<vmem>>, %arg3: memref<1x1x32xf32, #tpu.memory_space<vmem>>, %arg4: memref<1x48x48xf32, #tpu.memory_space<vmem>>, %arg5: memref<8x1x48x32xf32, #tpu.memory_space<vmem>>) attributes {dimension_semantics = [#tpu.dimension_semantics<parallel>], iteration_bounds = array<i64: 2>, scalar_prefetch = 0 : i64, scratch_operands = 0 : i64, tpu.core_type = #tpu.core_type<tc>, window_params = [{pipeline_mode = #tpu.pipeline_mode<synchronous>, transform_indices = @transform_0, window_bounds = array<i64: 384, 32>}, {transform_indices = @transform_1, window_bounds = array<i64: 1, 32, 32>}, {transform_indices = @transform_2, window_bounds = array<i64: 1, 1, 32>}, {transform_indices = @transform_3, window_bounds = array<i64: 1, 48, 48>}, {transform_indices = @transform_4, window_bounds = array<i64: 8, 1, 48, 32>}]} {
    %c0 = arith.constant 0 : index
    %c0_0 = arith.constant 0 : index
    %0 = vector.load %arg1[%c0, %c0_0] : memref<384x32xf32, #tpu.memory_space<vmem>>, vector<384x32xf32>
    %c0_1 = arith.constant 0 : index
    %c0_2 = arith.constant 0 : index
    %c0_3 = arith.constant 0 : index
    %1 = vector.load %arg2[%c0_1, %c0_2, %c0_3] : memref<1x32x32xf32, #tpu.memory_space<vmem>>, vector<1x32x32xf32>
    %2 = vector.shape_cast %1 : vector<1x32x32xf32> to vector<32x32xf32>
    %cst = arith.constant dense<0.000000e+00> : vector<384x32xf32>
    %3 = tpu.matmul %0, %2, %cst {dimension_numbers = #tpu.dot_dimension_numbers<[1], [0], [0], [1], [0, 0, 1, 1], [], []>} : vector<384x32xf32>, vector<32x32xf32>, vector<384x32xf32> -> vector<384x32xf32>
    %c0_4 = arith.constant 0 : index
    %c0_5 = arith.constant 0 : index
    %c0_6 = arith.constant 0 : index
    %4 = vector.load %arg3[%c0_4, %c0_5, %c0_6] : memref<1x1x32xf32, #tpu.memory_space<vmem>>, vector<1x1x32xf32>
    %5 = vector.shape_cast %4 : vector<1x1x32xf32> to vector<1x32xf32>
    %6 = vector.broadcast %5 : vector<1x32xf32> to vector<384x32xf32>
    %7 = arith.addf %3, %6 : vector<384x32xf32>
    %8 = vector.shape_cast %7 : vector<384x32xf32> to vector<8x48x32xf32>
    %c0_7 = arith.constant 0 : index
    %c0_8 = arith.constant 0 : index
    %c0_9 = arith.constant 0 : index
    %9 = vector.load %arg4[%c0_7, %c0_8, %c0_9] : memref<1x48x48xf32, #tpu.memory_space<vmem>>, vector<1x48x48xf32>
    %10 = vector.shape_cast %9 : vector<1x48x48xf32> to vector<48x48xf32>
    %11 = vector.shape_cast %10 : vector<48x48xf32> to vector<1x48x48xf32>
    %12 = vector.broadcast %11 : vector<1x48x48xf32> to vector<8x48x48xf32>
    "tpu.trace_start"() <{level = 10 : i32, message = "bvw,bwf->bvf"}> : () -> ()
    %cst_10 = arith.constant dense<0.000000e+00> : vector<8x48x32xf32>
    %13 = tpu.matmul %12, %8, %cst_10 {dimension_numbers = #tpu.dot_dimension_numbers<[2], [1], [1], [2], [0, 0, 0, 1, 1, 2], [0], [0]>} : vector<8x48x48xf32>, vector<8x48x32xf32>, vector<8x48x32xf32> -> vector<8x48x32xf32>
    "tpu.trace_stop"() : () -> ()
    %14 = vector.shape_cast %13 : vector<8x48x32xf32> to vector<8x1x48x32xf32>
    %c0_11 = arith.constant 0 : index
    %c0_12 = arith.constant 0 : index
    %c0_13 = arith.constant 0 : index
    %c0_14 = arith.constant 0 : index
    %15 = vector.load %arg5[%c0_11, %c0_12, %c0_13, %c0_14] : memref<8x1x48x32xf32, #tpu.memory_space<vmem>>, vector<8x1x48x32xf32>
    tpu.vector_store %arg5[%c0_11, %c0_12, %c0_13, %c0_14], %14 {strides = array<i32>} : memref<8x1x48x32xf32, #tpu.memory_space<vmem>>, vector<8x1x48x32xf32>,
    return
  }
  func.func @transform_0(%arg0: i32) -> (i32, i32) {
    %c0_i32 = arith.constant 0 : i32
    %c0_i32_0 = arith.constant 0 : i32
    %c0_i32_1 = arith.constant 0 : i32
    return %c0_i32, %c0_i32_0 : i32, i32
  }
  func.func @transform_1(%arg0: i32) -> (i32, i32, i32) {
    %c0_i32 = arith.constant 0 : i32
    %c0_i32_0 = arith.constant 0 : i32
    %c0_i32_1 = arith.constant 0 : i32
    return %arg0, %c0_i32, %c0_i32_0 : i32, i32, i32
  }
  func.func @transform_2(%arg0: i32) -> (i32, i32, i32) {
    %c0_i32 = arith.constant 0 : i32
    %c0_i32_0 = arith.constant 0 : i32
    %c0_i32_1 = arith.constant 0 : i32
    return %arg0, %c0_i32, %c0_i32_0 : i32, i32, i32
  }
  func.func @transform_3(%arg0: i32) -> (i32, i32, i32) {
    %c0_i32 = arith.constant 0 : i32
    %c0_i32_0 = arith.constant 0 : i32
    %c0_i32_1 = arith.constant 0 : i32
    return %arg0, %c0_i32, %c0_i32_0 : i32, i32, i32
  }
  func.func @transform_4(%arg0: i32) -> (i32, i32, i32, i32) {
    %c0_i32 = arith.constant 0 : i32
    %c0_i32_0 = arith.constant 0 : i32
    %c0_i32_1 = arith.constant 0 : i32
    %c0_i32_2 = arith.constant 0 : i32
    return %c0_i32, %arg0, %c0_i32_0, %c0_i32_1 : i32, i32, i32, i32
  }
}

</mosaic_0001>

<llo_original>
// kernel: graph_operate.1
$region0: #{graph_operate.1}
  #allocation0 [shape = 'u32[]', space=smem, size = 0x4, offset = 0x4, fixed_abs, tag = 'smem constant byte address 0x4 - core index']
  #allocation1 [shape = 'u32[144,128]{1,0:T(1,128)}', space=vmem, size = 0x12000, scoped, tag = 'internal scratch']
  %s0 = inlined_call_operand.vmem [shape: f32[384,32], index: 0, kind: input, shape index: {}]
  %s1 = inlined_call_operand.vmem [shape: f32[2,32,32], index: 1, kind: input, shape index: {}]
  %s2 = inlined_call_operand.vmem [shape: f32[2,1,32], index: 2, kind: input, shape index: {}]
  %s3 = inlined_call_operand.vmem [shape: f32[2,48,48], index: 3, kind: input, shape index: {}]
  %s4 = inlined_call_operand.vmem [shape: f32[8,2,48,32], index: 4, kind: output, shape index: {}]
  %s5 = sld [smem:[#allocation0]]
  $region83: #{graph_operate.1} parent=0
    _
  %s7 = ssub.s32 1, %s5
  %s8 = scalar_select 0, %s7, %s5
  $region1: #{graph_operate.1} parent=0
    #allocation2 [shape = 'u8[393216]{0}', space=vmem, size = 0x60000, scoped, tag = 'output window, operand 0']
    loop: start=0, step=1, limit=4
    $region2: #{graph_operate.1} parent=1 // loop_pre_header
      _
    $region3: #{graph_operate.1} parent=1 // loop_header
      %s10 = sphi 0, %s14
      %p11 = scmp.ge.s32.totalorder %s10, 4
      %s18 = sphi 0, %s18
      %s20 = sphi 0, %s18
      %s21 = sphi 0, %s20
      %s35 = sphi 0, %s21
      %s41 = sphi 0, %s43
      %s44 = sphi 0, %s41
      %s45 = sphi 0, %s44
      %s61 = sphi 0, %s45
      %s67 = sphi 0, %s69
      %s70 = sphi 0, %s67
      %s71 = sphi 0, %s70
      %s87 = sphi 0, %s71
      %s93 = sphi 0, %s95
      %s96 = sphi 0, %s93
      %s97 = sphi 0, %s96
      %s113 = sphi 0, %s97
      %s119 = sphi 0, %s121
      %s122 = sphi 0, %s119
      %s123 = sphi 0, %s122
      %s139 = sphi 0, %s123
    $region4: #{graph_operate.1} parent=1 // loop_header_branch
      %13 = sbr.rel (%p11) target = $region8
    $region5: #{graph_operate.1} parent=1 // loop_body
      %s15 = ssub.s32 %s10, 1
      %s16 = ssub.s32 %s10, 2
      %s17 = sadd.s32 %s10, 1
      %s19 = sadd.s32 %s18, 1
      %p22 = scmp.eq.s32.totalorder %s10, 1
      %p23 = scmp.ne.s32.totalorder %s18, %s20
      %p24 = scmp.eq.s32.totalorder %s10, 0
      %p25 = por %p23, %p24
      %p26 = scmp.ne.s32.totalorder %s18, %s20
      %p27 = scmp.eq.s32.totalorder %s15, 1
      %p28 = por %p26, %p27
      %p29 = scmp.ne.s32.totalorder %s20, %s21
      %p30 = scmp.eq.s32.totalorder %s15, 0
      %p31 = por %p29, %p30
      %p32 = scmp.ne.s32.totalorder %s20, %s21
      %p33 = scmp.eq.s32.totalorder %s16, 1
      %p34 = por %p32, %p33
      %p36 = scmp.ne.s32.totalorder %s21, %s35
      %p37 = scmp.eq.s32.totalorder %s16, 0
      %p38 = por %p36, %p37
      %s39 = ssub.s32 %s10, %s17
      %p40 = scmp.eq.s32.totalorder %s39, 0
      %s42 = sadd.s32 %s41, 1
      %s43 = scalar_select %p40, %s41, %s42
      %p46 = pneg %p40
      %p47 = scmp.eq.s32.totalorder %s10, 1
      %p48 = por %p46, %p47
      %p49 = scmp.ne.s32.totalorder %s41, %s44
      %p50 = scmp.eq.s32.totalorder %s10, 0
      %p51 = por %p49, %p50
      %p52 = scmp.ne.s32.totalorder %s41, %s44
      %p53 = scmp.eq.s32.totalorder %s15, 1
      %p54 = por %p52, %p53
      %p55 = scmp.ne.s32.totalorder %s44, %s45
      %p56 = scmp.eq.s32.totalorder %s15, 0
      %p57 = por %p55, %p56
      %p58 = scmp.ne.s32.totalorder %s44, %s45
      %p59 = scmp.eq.s32.totalorder %s16, 1
      %p60 = por %p58, %p59
      %p62 = scmp.ne.s32.totalorder %s45, %s61
      %p63 = scmp.eq.s32.totalorder %s16, 0
      %p64 = por %p62, %p63
      %s65 = ssub.s32 %s10, %s17
      %p66 = scmp.eq.s32.totalorder %s65, 0
      %s68 = sadd.s32 %s67, 1
      %s69 = scalar_select %p66, %s67, %s68
      %p72 = pneg %p66
      %p73 = scmp.eq.s32.totalorder %s10, 1
      %p74 = por %p72, %p73
      %p75 = scmp.ne.s32.totalorder %s67, %s70
      %p76 = scmp.eq.s32.totalorder %s10, 0
      %p77 = por %p75, %p76
      %p78 = scmp.ne.s32.totalorder %s67, %s70
      %p79 = scmp.eq.s32.totalorder %s15, 1
      %p80 = por %p78, %p79
      %p81 = scmp.ne.s32.totalorder %s70, %s71
      %p82 = scmp.eq.s32.totalorder %s15, 0
      %p83 = por %p81, %p82
      %p84 = scmp.ne.s32.totalorder %s70, %s71
      %p85 = scmp.eq.s32.totalorder %s16, 1
      %p86 = por %p84, %p85
      %p88 = scmp.ne.s32.totalorder %s71, %s87
      %p89 = scmp.eq.s32.totalorder %s16, 0
      %p90 = por %p88, %p89
      %s91 = ssub.s32 %s10, %s17
      %p92 = scmp.eq.s32.totalorder %s91, 0
      %s94 = sadd.s32 %s93, 1
      %s95 = scalar_select %p92, %s93, %s94
      %p98 = pneg %p92
      %p99 = scmp.eq.s32.totalorder %s10, 1
      %p100 = por %p98, %p99
      %p101 = scmp.ne.s32.totalorder %s93, %s96
      %p102 = scmp.eq.s32.totalorder %s10, 0
      %p103 = por %p101, %p102
      %p104 = scmp.ne.s32.totalorder %s93, %s96
      %p105 = scmp.eq.s32.totalorder %s15, 1
      %p106 = por %p104, %p105
      %p107 = scmp.ne.s32.totalorder %s96, %s97
      %p108 = scmp.eq.s32.totalorder %s15, 0
      %p109 = por %p107, %p108
      %p110 = scmp.ne.s32.totalorder %s96, %s97
      %p111 = scmp.eq.s32.totalorder %s16, 1
      %p112 = por %p110, %p111
      %p114 = scmp.ne.s32.totalorder %s97, %s113
      %p115 = scmp.eq.s32.totalorder %s16, 0
      %p116 = por %p114, %p115
      %s117 = ssub.s32 %s10, %s17
      %p118 = scmp.eq.s32.totalorder %s117, 0
      %s120 = sadd.s32 %s119, 1
      %s121 = scalar_select %p118, %s119, %s120
      %p124 = pneg %p118
      %p125 = scmp.eq.s32.totalorder %s10, 1
      %p126 = por %p124, %p125
      %p127 = scmp.ne.s32.totalorder %s119, %s122
      %p128 = scmp.eq.s32.totalorder %s10, 0
      %p129 = por %p127, %p128
      %p130 = scmp.ne.s32.totalorder %s119, %s122
      %p131 = scmp.eq.s32.totalorder %s15, 1
      %p132 = por %p130, %p131
      %p133 = scmp.ne.s32.totalorder %s122, %s123
      %p134 = scmp.eq.s32.totalorder %s15, 0
      %p135 = por %p133, %p134
      %p136 = scmp.ne.s32.totalorder %s122, %s123
      %p137 = scmp.eq.s32.totalorder %s16, 1
      %p138 = por %p136, %p137
      %p140 = scmp.ne.s32.totalorder %s123, %s139
      %p141 = scmp.eq.s32.totalorder %s16, 0
      %p142 = por %p140, %p141
      %p143 = scmp.le.s32.totalorder 1, %s10
      %p144 = scmp.lt.s32.totalorder %s10, 3
      %p145 = pnand %p143, %p144
      %p146 = pneg %p145
      // Predicated region
      $region9: #{graph_operate.1} parent=5 // pred_check
        _
      $region10: #{graph_operate.1} parent=5 // pred_check_branch
        %148 = sbr.rel (%p145) target = $region12
      $region11: #{graph_operate.1} parent=5 // pred_region
        %s149 = ssub.s32 %s10, 1
        // Predicated region
        $region13: #{graph_operate.1} parent=11 // pred_check
          %p150 = pneg %p31
        $region14: #{graph_operate.1} parent=11 // pred_check_branch
          %152 = sbr.rel (%p150) target = $region16
        $region15: #{graph_operate.1} parent=11 // pred_region
          _
        $region16: #{graph_operate.1} parent=11 // pred_fallthru
          _
      $region12: #{graph_operate.1} parent=5 // pred_fallthru
        _
      %p153 = scmp.lt.s32.totalorder %s10, 2
      // Predicated region
      $region17: #{graph_operate.1} parent=5 // pred_check
        %p154 = pneg %p153
      $region18: #{graph_operate.1} parent=5 // pred_check_branch
        %156 = sbr.rel (%p154) target = $region20
      $region19: #{graph_operate.1} parent=5 // pred_region
        // Predicated region
        $region21: #{graph_operate.1} parent=19 // pred_check
          %p157 = pneg %p51
        $region22: #{graph_operate.1} parent=19 // pred_check_branch
          %159 = sbr.rel (%p157) target = $region24
        $region23: #{graph_operate.1} parent=19 // pred_region
          %p160 = scmp.lt.s32.totalorder %s10, 1
          %s161 = scalar_select %p160, %s10, 1
          %s162 = smul.addr %s161, 4
          %s163 = smul.addr %s162, 8
          %s164 = scalar_lea.vmem %s1, %s163
        $region24: #{graph_operate.1} parent=19 // pred_fallthru
          _
        // Predicated region
        $region25: #{graph_operate.1} parent=19 // pred_check
          %p165 = pneg %p77
        $region26: #{graph_operate.1} parent=19 // pred_check_branch
          %167 = sbr.rel (%p165) target = $region28
        $region27: #{graph_operate.1} parent=19 // pred_region
          %p168 = scmp.lt.s32.totalorder %s10, 1
          %s169 = scalar_select %p168, %s10, 1
          %s170 = scalar_lea.vmem %s2, %s169
        $region28: #{graph_operate.1} parent=19 // pred_fallthru
          _
        // Predicated region
        $region29: #{graph_operate.1} parent=19 // pred_check
          %p171 = pneg %p103
        $region30: #{graph_operate.1} parent=19 // pred_check_branch
          %173 = sbr.rel (%p171) target = $region32
        $region31: #{graph_operate.1} parent=19 // pred_region
          %p174 = scmp.lt.s32.totalorder %s10, 1
          %s175 = scalar_select %p174, %s10, 1
          %s176 = smul.addr %s175, 6
          %s177 = smul.addr %s176, 8
          %s178 = scalar_lea.vmem %s3, %s177
        $region32: #{graph_operate.1} parent=19 // pred_fallthru
          _
      $region20: #{graph_operate.1} parent=5 // pred_fallthru
        _
      %p179 = scmp.le.s32.totalorder 1, %s10
      %p180 = scmp.lt.s32.totalorder %s10, 3
      %p181 = pnand %p179, %p180
      %p182 = pneg %p181
      // Predicated region
      $region33: #{graph_operate.1} parent=5 // pred_check
        _
      $region34: #{graph_operate.1} parent=5 // pred_check_branch
        %184 = sbr.rel (%p181) target = $region36
      $region35: #{graph_operate.1} parent=5 // pred_region
        %s185 = ssub.s32 %s10, 1
        %p186 = pneg %p31
        %p187 = pneg %p28
        %p188 = scmp.lt.s32.totalorder %s15, 1
        %s189 = scalar_select %p188, %s15, 1
        %s190 = smul.addr %s189, 4
        %s191 = smul.addr %s190, 8
        %s192 = scalar_lea.vmem %s1, %s191
        %p193 = pneg %p57
        %p194 = pneg %p54
        %p195 = scmp.lt.s32.totalorder %s15, 1
        %s196 = scalar_select %p195, %s15, 1
        %s197 = scalar_lea.vmem %s2, %s196
        %p198 = pneg %p83
        %p199 = pneg %p80
        %p200 = scmp.lt.s32.totalorder %s15, 1
        %s201 = scalar_select %p200, %s15, 1
        %s202 = smul.addr %s201, 6
        %s203 = smul.addr %s202, 8
        %s204 = scalar_lea.vmem %s3, %s203
        %p205 = pneg %p109
        %p206 = pneg %p106
        %p207 = pneg %p135
        %p208 = pneg %p132
        %s209 = sand.u32 %s122, 1
        %s210 = sand.u32 %s122, 1
        %s211 = smul.addr %s210, 384
        %s212 = scalar_lea.vmem [#allocation2], %s211
        %p213 = scmp.lt.s32.totalorder %s15, 1
        %s214 = scalar_select %p213, %s15, 1
        %s215 = smul.addr %s214, 4
        %s216 = smul.addr %s215, 8
        %s217 = scalar_lea.vmem %s1, %s216
        %p218 = scmp.lt.s32.totalorder %s15, 1
        %s219 = scalar_select %p218, %s15, 1
        %s220 = scalar_lea.vmem %s2, %s219
        %p221 = scmp.lt.s32.totalorder %s15, 1
        %s222 = scalar_select %p221, %s15, 1
        %s223 = smul.addr %s222, 6
        %s224 = smul.addr %s223, 8
        %s225 = scalar_lea.vmem %s3, %s224
        %v226 = vld [vmem:[%s0] sm:$0xff]
        %v227 = vld [vmem:[%s0 + $0x8] sm:$0xff]
        %v228 = vld [vmem:[%s0 + $0x10] sm:$0xff]
        %v229 = vld [vmem:[%s0 + $0x18] sm:$0xff]
        %v230 = vld [vmem:[%s0 + $0x20] sm:$0xff]
        %v231 = vld [vmem:[%s0 + $0x28] sm:$0xff]
        %v232 = vld [vmem:[%s0 + $0x30] sm:$0xff]
        %v233 = vld [vmem:[%s0 + $0x38] sm:$0xff]
        %v234 = vld [vmem:[%s0 + $0x40] sm:$0xff]
        %v235 = vld [vmem:[%s0 + $0x48] sm:$0xff]
        %v236 = vld [vmem:[%s0 + $0x50] sm:$0xff]
        %v237 = vld [vmem:[%s0 + $0x58] sm:$0xff]
        %v238 = vld [vmem:[%s0 + $0x60] sm:$0xff]
        %v239 = vld [vmem:[%s0 + $0x68] sm:$0xff]
        %v240 = vld [vmem:[%s0 + $0x70] sm:$0xff]
        %v241 = vld [vmem:[%s0 + $0x78] sm:$0xff]
        %v242 = vld [vmem:[%s0 + $0x80] sm:$0xff]
        %v243 = vld [vmem:[%s0 + $0x88] sm:$0xff]
        %v244 = vld [vmem:[%s0 + $0x90] sm:$0xff]
        %v245 = vld [vmem:[%s0 + $0x98] sm:$0xff]
        %v246 = vld [vmem:[%s0 + $0xa0] sm:$0xff]
        %v247 = vld [vmem:[%s0 + $0xa8] sm:$0xff]
        %v248 = vld [vmem:[%s0 + $0xb0] sm:$0xff]
        %v249 = vld [vmem:[%s0 + $0xb8] sm:$0xff]
        %v250 = vld [vmem:[%s0 + $0xc0] sm:$0xff]
        %v251 = vld [vmem:[%s0 + $0xc8] sm:$0xff]
        %v252 = vld [vmem:[%s0 + $0xd0] sm:$0xff]
        %v253 = vld [vmem:[%s0 + $0xd8] sm:$0xff]
        %v254 = vld [vmem:[%s0 + $0xe0] sm:$0xff]
        %v255 = vld [vmem:[%s0 + $0xe8] sm:$0xff]
        %v256 = vld [vmem:[%s0 + $0xf0] sm:$0xff]
        %v257 = vld [vmem:[%s0 + $0xf8] sm:$0xff]
        %v258 = vld [vmem:[%s0 + $0x100] sm:$0xff]
        %v259 = vld [vmem:[%s0 + $0x108] sm:$0xff]
        %v260 = vld [vmem:[%s0 + $0x110] sm:$0xff]
        %v261 = vld [vmem:[%s0 + $0x118] sm:$0xff]
        %v262 = vld [vmem:[%s0 + $0x120] sm:$0xff]
        %v263 = vld [vmem:[%s0 + $0x128] sm:$0xff]
        %v264 = vld [vmem:[%s0 + $0x130] sm:$0xff]
        %v265 = vld [vmem:[%s0 + $0x138] sm:$0xff]
        %v266 = vld [vmem:[%s0 + $0x140] sm:$0xff]
        %v267 = vld [vmem:[%s0 + $0x148] sm:$0xff]
        %v268 = vld [vmem:[%s0 + $0x150] sm:$0xff]
        %v269 = vld [vmem:[%s0 + $0x158] sm:$0xff]
        %v270 = vld [vmem:[%s0 + $0x160] sm:$0xff]
        %v271 = vld [vmem:[%s0 + $0x168] sm:$0xff]
        %v272 = vld [vmem:[%s0 + $0x170] sm:$0xff]
        %v273 = vld [vmem:[%s0 + $0x178] sm:$0xff]
        %v274 = vld [vmem:[%s217] sm:$0xff]
        %v275 = vld [vmem:[%s217 + $0x8] sm:$0xff]
        %v276 = vld [vmem:[%s217 + $0x10] sm:$0xff]
        %v277 = vld [vmem:[%s217 + $0x18] sm:$0xff]
        %v278 = vld [vmem:[%s220] sm:$0x1]
        %v280 = vlaneseq
        %v281 = vshrl.u32 %v280, 7
        %v282 = vsub.s32 0, %v281
        %v283 = vrot.slane %v278, %v282
        %vm285 = vcmask 261120
        %v287 = vsel %vm285, %v226, 0
        %v290 = vsel %vm285, %v227, 0
        %v293 = vsel %vm285, %v228, 0
        %v296 = vsel %vm285, %v229, 0
        %v299 = vsel %vm285, %v230, 0
        %v302 = vsel %vm285, %v231, 0
        %v305 = vsel %vm285, %v232, 0
        %v308 = vsel %vm285, %v233, 0
        %v311 = vsel %vm285, %v234, 0
        %v314 = vsel %vm285, %v235, 0
        %v317 = vsel %vm285, %v236, 0
        %v320 = vsel %vm285, %v237, 0
        %v323 = vsel %vm285, %v238, 0
        %v326 = vsel %vm285, %v239, 0
        %v329 = vsel %vm285, %v240, 0
        %v332 = vsel %vm285, %v241, 0
        %v335 = vsel %vm285, %v242, 0
        %v338 = vsel %vm285, %v243, 0
        %v341 = vsel %vm285, %v244, 0
        %v344 = vsel %vm285, %v245, 0
        %v347 = vsel %vm285, %v246, 0
        %v350 = vsel %vm285, %v247, 0
        %v353 = vsel %vm285, %v248, 0
        %v356 = vsel %vm285, %v249, 0
        %v359 = vsel %vm285, %v250, 0
        %v362 = vsel %vm285, %v251, 0
        %v365 = vsel %vm285, %v252, 0
        %v368 = vsel %vm285, %v253, 0
        %v371 = vsel %vm285, %v254, 0
        %v374 = vsel %vm285, %v255, 0
        %v377 = vsel %vm285, %v256, 0
        %v380 = vsel %vm285, %v257, 0
        %v383 = vsel %vm285, %v258, 0
        %v386 = vsel %vm285, %v259, 0
        %v389 = vsel %vm285, %v260, 0
        %v392 = vsel %vm285, %v261, 0
        %v395 = vsel %vm285, %v262, 0
        %v398 = vsel %vm285, %v263, 0
        %v401 = vsel %vm285, %v264, 0
        %v404 = vsel %vm285, %v265, 0
        %v407 = vsel %vm285, %v266, 0
        %v410 = vsel %vm285, %v267, 0
        %v413 = vsel %vm285, %v268, 0
        %v416 = vsel %vm285, %v269, 0
        %v419 = vsel %vm285, %v270, 0
        %v422 = vsel %vm285, %v271, 0
        %v425 = vsel %vm285, %v272, 0
        %v428 = vsel %vm285, %v273, 0
        %430 = vmatprep.subr.mxu0 0.0
        %431 = vmatpush1.msra.mxu0 %v274
        %432 = vmatprep.subr.mxu0 0.0
        %433 = vmatpush1.msra.mxu0 %v275
        %434 = vmatprep.subr.mxu0 0.0
        %435 = vmatpush1.msra.mxu0 %v276
        %436 = vmatprep.subr.mxu0 0.0
        %437 = vmatpush1.msra.mxu0 %v277
        %438 = vmatprep.subr.mxu0 0.0
        %439 = vmatpush1.msra.mxu0 0.0
        %440 = vmatprep.subr.mxu0 0.0
        %441 = vmatpush1.msra.mxu0 0.0
        %442 = vmatprep.subr.mxu0 0.0
        %443 = vmatpush1.msra.mxu0 0.0
        %444 = vmatprep.subr.mxu0 0.0
        %445 = vmatpush1.msra.mxu0 0.0
        %446 = vmatprep.subr.mxu0 0.0
        %447 = vmatpush1.msra.mxu0 0.0
        %448 = vmatprep.subr.mxu0 0.0
        %449 = vmatpush1.msra.mxu0 0.0
        %450 = vmatprep.subr.mxu0 0.0
        %451 = vmatpush1.msra.mxu0 0.0
        %452 = vmatprep.subr.mxu0 0.0
        %453 = vmatpush1.msra.mxu0 0.0
        %454 = vmatprep.subr.mxu0 0.0
        %455 = vmatpush1.msra.mxu0 0.0
        %456 = vmatprep.subr.mxu0 0.0
        %457 = vmatpush1.msra.mxu0 0.0
        %458 = vmatprep.subr.mxu0 0.0
        %459 = vmatpush1.msra.mxu0 0.0
        %460 = vmatprep.subr.mxu0 0.0
        %461 = vmatpush1.msra.mxu0 0.0
        %462 = vmatprep.subr.mxu0 0.0
        %463 = vmatpush1.msra.mxu0 0.0
        %464 = vmatprep.subr.mxu0 0.0
        %465 = vmatpush1.msra.mxu0 0.0
        %466 = vmatprep.subr.mxu0 0.0
        %467 = vmatpush1.msra.mxu0 0.0
        %468 = vmatprep.subr.mxu0 0.0
        %469 = vmatpush1.msra.mxu0 0.0
        %470 = vmatprep.subr.mxu0 0.0
        %471 = vmatpush1.msra.mxu0 0.0
        %472 = vmatprep.subr.mxu0 0.0
        %473 = vmatpush1.msra.mxu0 0.0
        %474 = vmatprep.subr.mxu0 0.0
        %475 = vmatpush1.msra.mxu0 0.0
        %476 = vmatprep.subr.mxu0 0.0
        %477 = vmatpush1.msra.mxu0 0.0
        %478 = vmatprep.subr.mxu0 0.0
        %479 = vmatpush1.msra.mxu0 0.0
        %480 = vmatprep.subr.mxu0 0.0
        %481 = vmatpush1.msra.mxu0 0.0
        %482 = vmatprep.subr.mxu0 0.0
        %483 = vmatpush1.msra.mxu0 0.0
        %484 = vmatprep.subr.mxu0 0.0
        %485 = vmatpush1.msra.mxu0 0.0
        %486 = vmatprep.subr.mxu0 0.0
        %487 = vmatpush1.msra.mxu0 0.0
        %488 = vmatprep.subr.mxu0 0.0
        %489 = vmatpush1.msra.mxu0 0.0
        %490 = vmatprep.subr.mxu0 0.0
        %491 = vmatpush1.msra.mxu0 0.0
        %492 = vmatprep.subr.mxu0 0.0
        %493 = vmatpush1.msra.mxu0 0.0
        %494 = vmatprep.mubr.f32.mxu0 0.0
        %495 = vmatmul.mubr.f32.gmra.mrb[0].mxu0 %v287
        %v496 = vpop.f32.mrb[0].mxu0
        %v497 = vadd.f32 %v283, %v496
        %v498 = vpop.f32.mrb[0].mxu0
        %499 = vmatprep.mubr.f32.mxu0 0.0
        %500 = vmatmul.mubr.f32.gmra.mrb[0].mxu0 %v290
        %v501 = vpop.f32.mrb[0].mxu0
        %v502 = vadd.f32 %v283, %v501
        %v503 = vpop.f32.mrb[0].mxu0
        %504 = vmatprep.mubr.f32.mxu0 0.0
        %505 = vmatmul.mubr.f32.gmra.mrb[0].mxu0 %v293
        %v506 = vpop.f32.mrb[0].mxu0
        %v507 = vadd.f32 %v283, %v506
        %v508 = vpop.f32.mrb[0].mxu0
        %509 = vmatprep.mubr.f32.mxu0 0.0
        %510 = vmatmul.mubr.f32.gmra.mrb[0].mxu0 %v296
        %v511 = vpop.f32.mrb[0].mxu0
        %v512 = vadd.f32 %v283, %v511
        %v513 = vpop.f32.mrb[0].mxu0
        %514 = vmatprep.mubr.f32.mxu0 0.0
        %515 = vmatmul.mubr.f32.gmra.mrb[0].mxu0 %v299
        %v516 = vpop.f32.mrb[0].mxu0
        %v517 = vadd.f32 %v283, %v516
        %v518 = vpop.f32.mrb[0].mxu0
        %519 = vmatprep.mubr.f32.mxu0 0.0
        %520 = vmatmul.mubr.f32.gmra.mrb[0].mxu0 %v302
        %v521 = vpop.f32.mrb[0].mxu0
        %v522 = vadd.f32 %v283, %v521
        %v523 = vpop.f32.mrb[0].mxu0
        %524 = vmatprep.mubr.f32.mxu0 0.0
        %525 = vmatmul.mubr.f32.gmra.mrb[0].mxu0 %v305
        %v526 = vpop.f32.mrb[0].mxu0
        %v527 = vadd.f32 %v283, %v526
        %v528 = vpop.f32.mrb[0].mxu0
        %529 = vmatprep.mubr.f32.mxu0 0.0
        %530 = vmatmul.mubr.f32.gmra.mrb[0].mxu0 %v308
        %v531 = vpop.f32.mrb[0].mxu0
        %v532 = vadd.f32 %v283, %v531
        %v533 = vpop.f32.mrb[0].mxu0
        %534 = vmatprep.mubr.f32.mxu0 0.0
        %535 = vmatmul.mubr.f32.gmra.mrb[0].mxu0 %v311
        %v536 = vpop.f32.mrb[0].mxu0
        %v537 = vadd.f32 %v283, %v536
        %v538 = vpop.f32.mrb[0].mxu0
        %539 = vmatprep.mubr.f32.mxu0 0.0
        %540 = vmatmul.mubr.f32.gmra.mrb[0].mxu0 %v314
        %v541 = vpop.f32.mrb[0].mxu0
        %v542 = vadd.f32 %v283, %v541
        %v543 = vpop.f32.mrb[0].mxu0
        %544 = vmatprep.mubr.f32.mxu0 0.0
        %545 = vmatmul.mubr.f32.gmra.mrb[0].mxu0 %v317
        %v546 = vpop.f32.mrb[0].mxu0
        %v547 = vadd.f32 %v283, %v546
        %v548 = vpop.f32.mrb[0].mxu0
        %549 = vmatprep.mubr.f32.mxu0 0.0
        %550 = vmatmul.mubr.f32.gmra.mrb[0].mxu0 %v320
        %v551 = vpop.f32.mrb[0].mxu0
        %v552 = vadd.f32 %v283, %v551
        %v553 = vpop.f32.mrb[0].mxu0
        %554 = vmatprep.mubr.f32.mxu0 0.0
        %555 = vmatmul.mubr.f32.gmra.mrb[0].mxu0 %v323
        %v556 = vpop.f32.mrb[0].mxu0
        %v557 = vadd.f32 %v283, %v556
        %v558 = vpop.f32.mrb[0].mxu0
        %559 = vmatprep.mubr.f32.mxu0 0.0
        %560 = vmatmul.mubr.f32.gmra.mrb[0].mxu0 %v326
        %v561 = vpop.f32.mrb[0].mxu0
        %v562 = vadd.f32 %v283, %v561
        %v563 = vpop.f32.mrb[0].mxu0
        %564 = vmatprep.mubr.f32.mxu0 0.0
        %565 = vmatmul.mubr.f32.gmra.mrb[0].mxu0 %v329
        %v566 = vpop.f32.mrb[0].mxu0
        %v567 = vadd.f32 %v283, %v566
        %v568 = vpop.f32.mrb[0].mxu0
        %569 = vmatprep.mubr.f32.mxu0 0.0
        %570 = vmatmul.mubr.f32.gmra.mrb[0].mxu0 %v332
        %v571 = vpop.f32.mrb[0].mxu0
        %v572 = vadd.f32 %v283, %v571
        %v573 = vpop.f32.mrb[0].mxu0
        %574 = vmatprep.mubr.f32.mxu0 0.0
        %575 = vmatmul.mubr.f32.gmra.mrb[0].mxu0 %v335
        %v576 = vpop.f32.mrb[0].mxu0
        %v577 = vadd.f32 %v283, %v576
        %v578 = vpop.f32.mrb[0].mxu0
        %579 = vmatprep.mubr.f32.mxu0 0.0
        %580 = vmatmul.mubr.f32.gmra.mrb[0].mxu0 %v338
        %v581 = vpop.f32.mrb[0].mxu0
        %v582 = vadd.f32 %v283, %v581
        %v583 = vpop.f32.mrb[0].mxu0
        %584 = vmatprep.mubr.f32.mxu0 0.0
        %585 = vmatmul.mubr.f32.gmra.mrb[0].mxu0 %v341
        %v586 = vpop.f32.mrb[0].mxu0
        %v587 = vadd.f32 %v283, %v586
        %v588 = vpop.f32.mrb[0].mxu0
        %589 = vmatprep.mubr.f32.mxu0 0.0
        %590 = vmatmul.mubr.f32.gmra.mrb[0].mxu0 %v344
        %v591 = vpop.f32.mrb[0].mxu0
        %v592 = vadd.f32 %v283, %v591
        %v593 = vpop.f32.mrb[0].mxu0
        %594 = vmatprep.mubr.f32.mxu0 0.0
        %595 = vmatmul.mubr.f32.gmra.mrb[0].mxu0 %v347
        %v596 = vpop.f32.mrb[0].mxu0
        %v597 = vadd.f32 %v283, %v596
        %v598 = vpop.f32.mrb[0].mxu0
        %599 = vmatprep.mubr.f32.mxu0 0.0
        %600 = vmatmul.mubr.f32.gmra.mrb[0].mxu0 %v350
        %v601 = vpop.f32.mrb[0].mxu0
        %v602 = vadd.f32 %v283, %v601
        %v603 = vpop.f32.mrb[0].mxu0
        %604 = vmatprep.mubr.f32.mxu0 0.0
        %605 = vmatmul.mubr.f32.gmra.mrb[0].mxu0 %v353
        %v606 = vpop.f32.mrb[0].mxu0
        %v607 = vadd.f32 %v283, %v606
        %v608 = vpop.f32.mrb[0].mxu0
        %609 = vmatprep.mubr.f32.mxu0 0.0
        %610 = vmatmul.mubr.f32.gmra.mrb[0].mxu0 %v356
        %v611 = vpop.f32.mrb[0].mxu0
        %v612 = vadd.f32 %v283, %v611
        %v613 = vpop.f32.mrb[0].mxu0
        %614 = vmatprep.mubr.f32.mxu0 0.0
        %615 = vmatmul.mubr.f32.gmra.mrb[0].mxu0 %v359
        %v616 = vpop.f32.mrb[0].mxu0
        %v617 = vadd.f32 %v283, %v616
        %v618 = vpop.f32.mrb[0].mxu0
        %619 = vmatprep.mubr.f32.mxu0 0.0
        %620 = vmatmul.mubr.f32.gmra.mrb[0].mxu0 %v362
        %v621 = vpop.f32.mrb[0].mxu0
        %v622 = vadd.f32 %v283, %v621
        %v623 = vpop.f32.mrb[0].mxu0
        %624 = vmatprep.mubr.f32.mxu0 0.0
        %625 = vmatmul.mubr.f32.gmra.mrb[0].mxu0 %v365
        %v626 = vpop.f32.mrb[0].mxu0
        %v627 = vadd.f32 %v283, %v626
        %v628 = vpop.f32.mrb[0].mxu0
        %629 = vmatprep.mubr.f32.mxu0 0.0
        %630 = vmatmul.mubr.f32.gmra.mrb[0].mxu0 %v368
        %v631 = vpop.f32.mrb[0].mxu0
        %v632 = vadd.f32 %v283, %v631
        %v633 = vpop.f32.mrb[0].mxu0
        %634 = vmatprep.mubr.f32.mxu0 0.0
        %635 = vmatmul.mubr.f32.gmra.mrb[0].mxu0 %v371
        %v636 = vpop.f32.mrb[0].mxu0
        %v637 = vadd.f32 %v283, %v636
        %v638 = vpop.f32.mrb[0].mxu0
        %639 = vmatprep.mubr.f32.mxu0 0.0
        %640 = vmatmul.mubr.f32.gmra.mrb[0].mxu0 %v374
        %v641 = vpop.f32.mrb[0].mxu0
        %v642 = vadd.f32 %v283, %v641
        %v643 = vpop.f32.mrb[0].mxu0
        %644 = vmatprep.mubr.f32.mxu0 0.0
        %645 = vmatmul.mubr.f32.gmra.mrb[0].mxu0 %v377
        %v646 = vpop.f32.mrb[0].mxu0
        %v647 = vadd.f32 %v283, %v646
        %v648 = vpop.f32.mrb[0].mxu0
        %649 = vmatprep.mubr.f32.mxu0 0.0
        %650 = vmatmul.mubr.f32.gmra.mrb[0].mxu0 %v380
        %v651 = vpop.f32.mrb[0].mxu0
        %v652 = vadd.f32 %v283, %v651
        %v653 = vpop.f32.mrb[0].mxu0
        %654 = vmatprep.mubr.f32.mxu0 0.0
        %655 = vmatmul.mubr.f32.gmra.mrb[0].mxu0 %v383
        %v656 = vpop.f32.mrb[0].mxu0
        %v657 = vadd.f32 %v283, %v656
        %v658 = vpop.f32.mrb[0].mxu0
        %659 = vmatprep.mubr.f32.mxu0 0.0
        %660 = vmatmul.mubr.f32.gmra.mrb[0].mxu0 %v386
        %v661 = vpop.f32.mrb[0].mxu0
        %v662 = vadd.f32 %v283, %v661
        %v663 = vpop.f32.mrb[0].mxu0
        %664 = vmatprep.mubr.f32.mxu0 0.0
        %665 = vmatmul.mubr.f32.gmra.mrb[0].mxu0 %v389
        %v666 = vpop.f32.mrb[0].mxu0
        %v667 = vadd.f32 %v283, %v666
        %v668 = vpop.f32.mrb[0].mxu0
        %669 = vmatprep.mubr.f32.mxu0 0.0
        %670 = vmatmul.mubr.f32.gmra.mrb[0].mxu0 %v392
        %v671 = vpop.f32.mrb[0].mxu0
        %v672 = vadd.f32 %v283, %v671
        %v673 = vpop.f32.mrb[0].mxu0
        %674 = vmatprep.mubr.f32.mxu0 0.0
        %675 = vmatmul.mubr.f32.gmra.mrb[0].mxu0 %v395
        %v676 = vpop.f32.mrb[0].mxu0
        %v677 = vadd.f32 %v283, %v676
        %v678 = vpop.f32.mrb[0].mxu0
        %679 = vmatprep.mubr.f32.mxu0 0.0
        %680 = vmatmul.mubr.f32.gmra.mrb[0].mxu0 %v398
        %v681 = vpop.f32.mrb[0].mxu0
        %v682 = vadd.f32 %v283, %v681
        %v683 = vpop.f32.mrb[0].mxu0
        %684 = vmatprep.mubr.f32.mxu0 0.0
        %685 = vmatmul.mubr.f32.gmra.mrb[0].mxu0 %v401
        %v686 = vpop.f32.mrb[0].mxu0
        %v687 = vadd.f32 %v283, %v686
        %v688 = vpop.f32.mrb[0].mxu0
        %689 = vmatprep.mubr.f32.mxu0 0.0
        %690 = vmatmul.mubr.f32.gmra.mrb[0].mxu0 %v404
        %v691 = vpop.f32.mrb[0].mxu0
        %v692 = vadd.f32 %v283, %v691
        %v693 = vpop.f32.mrb[0].mxu0
        %694 = vmatprep.mubr.f32.mxu0 0.0
        %695 = vmatmul.mubr.f32.gmra.mrb[0].mxu0 %v407
        %v696 = vpop.f32.mrb[0].mxu0
        %v697 = vadd.f32 %v283, %v696
        %v698 = vpop.f32.mrb[0].mxu0
        %699 = vmatprep.mubr.f32.mxu0 0.0
        %700 = vmatmul.mubr.f32.gmra.mrb[0].mxu0 %v410
        %v701 = vpop.f32.mrb[0].mxu0
        %v702 = vadd.f32 %v283, %v701
        %v703 = vpop.f32.mrb[0].mxu0
        %704 = vmatprep.mubr.f32.mxu0 0.0
        %705 = vmatmul.mubr.f32.gmra.mrb[0].mxu0 %v413
        %v706 = vpop.f32.mrb[0].mxu0
        %v707 = vadd.f32 %v283, %v706
        %v708 = vpop.f32.mrb[0].mxu0
        %709 = vmatprep.mubr.f32.mxu0 0.0
        %710 = vmatmul.mubr.f32.gmra.mrb[0].mxu0 %v416
        %v711 = vpop.f32.mrb[0].mxu0
        %v712 = vadd.f32 %v283, %v711
        %v713 = vpop.f32.mrb[0].mxu0
        %714 = vmatprep.mubr.f32.mxu0 0.0
        %715 = vmatmul.mubr.f32.gmra.mrb[0].mxu0 %v419
        %v716 = vpop.f32.mrb[0].mxu0
        %v717 = vadd.f32 %v283, %v716
        %v718 = vpop.f32.mrb[0].mxu0
        %719 = vmatprep.mubr.f32.mxu0 0.0
        %720 = vmatmul.mubr.f32.gmra.mrb[0].mxu0 %v422
        %v721 = vpop.f32.mrb[0].mxu0
        %v722 = vadd.f32 %v283, %v721
        %v723 = vpop.f32.mrb[0].mxu0
        %724 = vmatprep.mubr.f32.mxu0 0.0
        %725 = vmatmul.mubr.f32.gmra.mrb[0].mxu0 %v425
        %v726 = vpop.f32.mrb[0].mxu0
        %v727 = vadd.f32 %v283, %v726
        %v728 = vpop.f32.mrb[0].mxu0
        %729 = vmatprep.mubr.f32.mxu0 0.0
        %730 = vmatmul.mubr.f32.gmra.mrb[0].mxu0 %v428
        %v731 = vpop.f32.mrb[0].mxu0
        %v732 = vadd.f32 %v283, %v731
        %v733 = vpop.f32.mrb[0].mxu0
        %734 = vdwg.mxu0
        %v735 = vld [vmem:[%s225] sm:$0xff]
        %v736 = vld [vmem:[%s225 + $0x8] sm:$0xff]
        %v737 = vld [vmem:[%s225 + $0x10] sm:$0xff]
        %v738 = vld [vmem:[%s225 + $0x18] sm:$0xff]
        %v739 = vld [vmem:[%s225 + $0x20] sm:$0xff]
        %v740 = vld [vmem:[%s225 + $0x28] sm:$0xff]
        %vm741 = vcmask 392192
        %v743 = vsel %vm741, %v735, 0
        %v746 = vsel %vm741, %v736, 0
        %v749 = vsel %vm741, %v737, 0
        %v752 = vsel %vm741, %v738, 0
        %v755 = vsel %vm741, %v739, 0
        %v758 = vsel %vm741, %v740, 0
        %760 = vmatprep.subr.mxu0 0.0
        %761 = vmatpush1.msra.mxu0 %v497
        %762 = vmatprep.subr.mxu0 0.0
        %763 = vmatpush1.msra.mxu0 %v502
        %764 = vmatprep.subr.mxu0 0.0
        %765 = vmatpush1.msra.mxu0 %v507
        %766 = vmatprep.subr.mxu0 0.0
        %767 = vmatpush1.msra.mxu0 %v512
        %768 = vmatprep.subr.mxu0 0.0
        %769 = vmatpush1.msra.mxu0 %v517
        %770 = vmatprep.subr.mxu0 0.0
        %771 = vmatpush1.msra.mxu0 %v522
        %772 = vmatprep.subr.mxu0 0.0
        %773 = vmatpush1.msra.mxu0 0.0
        %774 = vmatprep.subr.mxu0 0.0
        %775 = vmatpush1.msra.mxu0 0.0
        %776 = vmatprep.subr.mxu0 0.0
        %777 = vmatpush1.msra.mxu0 0.0
        %778 = vmatprep.subr.mxu0 0.0
        %779 = vmatpush1.msra.mxu0 0.0
        %780 = vmatprep.subr.mxu0 0.0
        %781 = vmatpush1.msra.mxu0 0.0
        %782 = vmatprep.subr.mxu0 0.0
        %783 = vmatpush1.msra.mxu0 0.0
        %784 = vmatprep.subr.mxu0 0.0
        %785 = vmatpush1.msra.mxu0 0.0
        %786 = vmatprep.subr.mxu0 0.0
        %787 = vmatpush1.msra.mxu0 0.0
        %788 = vmatprep.subr.mxu0 0.0
        %789 = vmatpush1.msra.mxu0 0.0
        %790 = vmatprep.subr.mxu0 0.0
        %791 = vmatpush1.msra.mxu0 0.0
        %792 = vmatprep.subr.mxu0 0.0
        %793 = vmatpush1.msra.mxu0 0.0
        %794 = vmatprep.subr.mxu0 0.0
        %795 = vmatpush1.msra.mxu0 0.0
        %796 = vmatprep.subr.mxu0 0.0
        %797 = vmatpush1.msra.mxu0 0.0
        %798 = vmatprep.subr.mxu0 0.0
        %799 = vmatpush1.msra.mxu0 0.0
        %800 = vmatprep.subr.mxu0 0.0
        %801 = vmatpush1.msra.mxu0 0.0
        %802 = vmatprep.subr.mxu0 0.0
        %803 = vmatpush1.msra.mxu0 0.0
        %804 = vmatprep.subr.mxu0 0.0
        %805 = vmatpush1.msra.mxu0 0.0
        %806 = vmatprep.subr.mxu0 0.0
        %807 = vmatpush1.msra.mxu0 0.0
        %808 = vmatprep.subr.mxu0 0.0
        %809 = vmatpush1.msra.mxu0 0.0
        %810 = vmatprep.subr.mxu0 0.0
        %811 = vmatpush1.msra.mxu0 0.0
        %812 = vmatprep.subr.mxu0 0.0
        %813 = vmatpush1.msra.mxu0 0.0
        %814 = vmatprep.subr.mxu0 0.0
        %815 = vmatpush1.msra.mxu0 0.0
        %816 = vmatprep.subr.mxu0 0.0
        %817 = vmatpush1.msra.mxu0 0.0
        %818 = vmatprep.subr.mxu0 0.0
        %819 = vmatpush1.msra.mxu0 0.0
        %820 = vmatprep.subr.mxu0 0.0
        %821 = vmatpush1.msra.mxu0 0.0
        %822 = vmatprep.subr.mxu0 0.0
        %823 = vmatpush1.msra.mxu0 0.0
        %824 = vmatprep.mubr.f32.mxu0 0.0
        %825 = vmatmul.mubr.f32.gmra.mrb[0].mxu0 %v743
        %v826 = vpop.f32.mrb[0].mxu0
        %v827 = vadd.f32 0.0, %v826
        %v828 = vpop.f32.mrb[0].mxu0
        %829 = vmatprep.mubr.f32.mxu0 0.0
        %830 = vmatmul.mubr.f32.gmra.mrb[0].mxu0 %v746
        %v831 = vpop.f32.mrb[0].mxu0
        %v832 = vadd.f32 0.0, %v831
        %v833 = vpop.f32.mrb[0].mxu0
        %834 = vmatprep.mubr.f32.mxu0 0.0
        %835 = vmatmul.mubr.f32.gmra.mrb[0].mxu0 %v749
        %v836 = vpop.f32.mrb[0].mxu0
        %v837 = vadd.f32 0.0, %v836
        %v838 = vpop.f32.mrb[0].mxu0
        %839 = vmatprep.mubr.f32.mxu0 0.0
        %840 = vmatmul.mubr.f32.gmra.mrb[0].mxu0 %v752
        %v841 = vpop.f32.mrb[0].mxu0
        %v842 = vadd.f32 0.0, %v841
        %v843 = vpop.f32.mrb[0].mxu0
        %844 = vmatprep.mubr.f32.mxu0 0.0
        %845 = vmatmul.mubr.f32.gmra.mrb[0].mxu0 %v755
        %v846 = vpop.f32.mrb[0].mxu0
        %v847 = vadd.f32 0.0, %v846
        %v848 = vpop.f32.mrb[0].mxu0
        %849 = vmatprep.mubr.f32.mxu0 0.0
        %850 = vmatmul.mubr.f32.gmra.mrb[0].mxu0 %v758
        %v851 = vpop.f32.mrb[0].mxu0
        %v852 = vadd.f32 0.0, %v851
        %v853 = vpop.f32.mrb[0].mxu0
        %854 = vdwg.mxu0
        %855 = vmatprep.subr.mxu0 0.0
        %856 = vmatpush1.msra.mxu0 %v527
        %857 = vmatprep.subr.mxu0 0.0
        %858 = vmatpush1.msra.mxu0 %v532
        %859 = vmatprep.subr.mxu0 0.0
        %860 = vmatpush1.msra.mxu0 %v537
        %861 = vmatprep.subr.mxu0 0.0
        %862 = vmatpush1.msra.mxu0 %v542
        %863 = vmatprep.subr.mxu0 0.0
        %864 = vmatpush1.msra.mxu0 %v547
        %865 = vmatprep.subr.mxu0 0.0
        %866 = vmatpush1.msra.mxu0 %v552
        %867 = vmatprep.subr.mxu0 0.0
        %868 = vmatpush1.msra.mxu0 0.0
        %869 = vmatprep.subr.mxu0 0.0
        %870 = vmatpush1.msra.mxu0 0.0
        %871 = vmatprep.subr.mxu0 0.0
        %872 = vmatpush1.msra.mxu0 0.0
        %873 = vmatprep.subr.mxu0 0.0
        %874 = vmatpush1.msra.mxu0 0.0
        %875 = vmatprep.subr.mxu0 0.0
        %876 = vmatpush1.msra.mxu0 0.0
        %877 = vmatprep.subr.mxu0 0.0
        %878 = vmatpush1.msra.mxu0 0.0
        %879 = vmatprep.subr.mxu0 0.0
        %880 = vmatpush1.msra.mxu0 0.0
        %881 = vmatprep.subr.mxu0 0.0
        %882 = vmatpush1.msra.mxu0 0.0
        %883 = vmatprep.subr.mxu0 0.0
        %884 = vmatpush1.msra.mxu0 0.0
        %885 = vmatprep.subr.mxu0 0.0
        %886 = vmatpush1.msra.mxu0 0.0
        %887 = vmatprep.subr.mxu0 0.0
        %888 = vmatpush1.msra.mxu0 0.0
        %889 = vmatprep.subr.mxu0 0.0
        %890 = vmatpush1.msra.mxu0 0.0
        %891 = vmatprep.subr.mxu0 0.0
        %892 = vmatpush1.msra.mxu0 0.0
        %893 = vmatprep.subr.mxu0 0.0
        %894 = vmatpush1.msra.mxu0 0.0
        %895 = vmatprep.subr.mxu0 0.0
        %896 = vmatpush1.msra.mxu0 0.0
        %897 = vmatprep.subr.mxu0 0.0
        %898 = vmatpush1.msra.mxu0 0.0
        %899 = vmatprep.subr.mxu0 0.0
        %900 = vmatpush1.msra.mxu0 0.0
        %901 = vmatprep.subr.mxu0 0.0
        %902 = vmatpush1.msra.mxu0 0.0
        %903 = vmatprep.subr.mxu0 0.0
        %904 = vmatpush1.msra.mxu0 0.0
        %905 = vmatprep.subr.mxu0 0.0
        %906 = vmatpush1.msra.mxu0 0.0
        %907 = vmatprep.subr.mxu0 0.0
        %908 = vmatpush1.msra.mxu0 0.0
        %909 = vmatprep.subr.mxu0 0.0
        %910 = vmatpush1.msra.mxu0 0.0
        %911 = vmatprep.subr.mxu0 0.0
        %912 = vmatpush1.msra.mxu0 0.0
        %913 = vmatprep.subr.mxu0 0.0
        %914 = vmatpush1.msra.mxu0 0.0
        %915 = vmatprep.subr.mxu0 0.0
        %916 = vmatpush1.msra.mxu0 0.0
        %917 = vmatprep.subr.mxu0 0.0
        %918 = vmatpush1.msra.mxu0 0.0
        %919 = vmatprep.mubr.f32.mxu0 0.0
        %920 = vmatmul.mubr.f32.gmra.mrb[0].mxu0 %v743
        %v921 = vpop.f32.mrb[0].mxu0
        %v922 = vadd.f32 0.0, %v921
        %v923 = vpop.f32.mrb[0].mxu0
        %924 = vmatprep.mubr.f32.mxu0 0.0
        %925 = vmatmul.mubr.f32.gmra.mrb[0].mxu0 %v746
        %v926 = vpop.f32.mrb[0].mxu0
        %v927 = vadd.f32 0.0, %v926
        %v928 = vpop.f32.mrb[0].mxu0
        %929 = vmatprep.mubr.f32.mxu0 0.0
        %930 = vmatmul.mubr.f32.gmra.mrb[0].mxu0 %v749
        %v931 = vpop.f32.mrb[0].mxu0
        %v932 = vadd.f32 0.0, %v931
        %v933 = vpop.f32.mrb[0].mxu0
        %934 = vmatprep.mubr.f32.mxu0 0.0
        %935 = vmatmul.mubr.f32.gmra.mrb[0].mxu0 %v752
        %v936 = vpop.f32.mrb[0].mxu0
        %v937 = vadd.f32 0.0, %v936
        %v938 = vpop.f32.mrb[0].mxu0
        %939 = vmatprep.mubr.f32.mxu0 0.0
        %940 = vmatmul.mubr.f32.gmra.mrb[0].mxu0 %v755
        %v941 = vpop.f32.mrb[0].mxu0
        %v942 = vadd.f32 0.0, %v941
        %v943 = vpop.f32.mrb[0].mxu0
        %944 = vmatprep.mubr.f32.mxu0 0.0
        %945 = vmatmul.mubr.f32.gmra.mrb[0].mxu0 %v758
        %v946 = vpop.f32.mrb[0].mxu0
        %v947 = vadd.f32 0.0, %v946
        %v948 = vpop.f32.mrb[0].mxu0
        %949 = vdwg.mxu0
        %950 = vmatprep.subr.mxu0 0.0
        %951 = vmatpush1.msra.mxu0 %v557
        %952 = vmatprep.subr.mxu0 0.0
        %953 = vmatpush1.msra.mxu0 %v562
        %954 = vmatprep.subr.mxu0 0.0
        %955 = vmatpush1.msra.mxu0 %v567
        %956 = vmatprep.subr.mxu0 0.0
        %957 = vmatpush1.msra.mxu0 %v572
        %958 = vmatprep.subr.mxu0 0.0
        %959 = vmatpush1.msra.mxu0 %v577
        %960 = vmatprep.subr.mxu0 0.0
        %961 = vmatpush1.msra.mxu0 %v582
        %962 = vmatprep.subr.mxu0 0.0
        %963 = vmatpush1.msra.mxu0 0.0
        %964 = vmatprep.subr.mxu0 0.0
        %965 = vmatpush1.msra.mxu0 0.0
        %966 = vmatprep.subr.mxu0 0.0
        %967 = vmatpush1.msra.mxu0 0.0
        %968 = vmatprep.subr.mxu0 0.0
        %969 = vmatpush1.msra.mxu0 0.0
        %970 = vmatprep.subr.mxu0 0.0
        %971 = vmatpush1.msra.mxu0 0.0
        %972 = vmatprep.subr.mxu0 0.0
        %973 = vmatpush1.msra.mxu0 0.0
        %974 = vmatprep.subr.mxu0 0.0
        %975 = vmatpush1.msra.mxu0 0.0
        %976 = vmatprep.subr.mxu0 0.0
        %977 = vmatpush1.msra.mxu0 0.0
        %978 = vmatprep.subr.mxu0 0.0
        %979 = vmatpush1.msra.mxu0 0.0
        %980 = vmatprep.subr.mxu0 0.0
        %981 = vmatpush1.msra.mxu0 0.0
        %982 = vmatprep.subr.mxu0 0.0
        %983 = vmatpush1.msra.mxu0 0.0
        %984 = vmatprep.subr.mxu0 0.0
        %985 = vmatpush1.msra.mxu0 0.0
        %986 = vmatprep.subr.mxu0 0.0
        %987 = vmatpush1.msra.mxu0 0.0
        %988 = vmatprep.subr.mxu0 0.0
        %989 = vmatpush1.msra.mxu0 0.0
        %990 = vmatprep.subr.mxu0 0.0
        %991 = vmatpush1.msra.mxu0 0.0
        %992 = vmatprep.subr.mxu0 0.0
        %993 = vmatpush1.msra.mxu0 0.0
        %994 = vmatprep.subr.mxu0 0.0
        %995 = vmatpush1.msra.mxu0 0.0
        %996 = vmatprep.subr.mxu0 0.0
        %997 = vmatpush1.msra.mxu0 0.0
        %998 = vmatprep.subr.mxu0 0.0
        %999 = vmatpush1.msra.mxu0 0.0
        %1000 = vmatprep.subr.mxu0 0.0
        %1001 = vmatpush1.msra.mxu0 0.0
        %1002 = vmatprep.subr.mxu0 0.0
        %1003 = vmatpush1.msra.mxu0 0.0
        %1004 = vmatprep.subr.mxu0 0.0
        %1005 = vmatpush1.msra.mxu0 0.0
        %1006 = vmatprep.subr.mxu0 0.0
        %1007 = vmatpush1.msra.mxu0 0.0
        %1008 = vmatprep.subr.mxu0 0.0
        %1009 = vmatpush1.msra.mxu0 0.0
        %1010 = vmatprep.subr.mxu0 0.0
        %1011 = vmatpush1.msra.mxu0 0.0
        %1012 = vmatprep.subr.mxu0 0.0
        %1013 = vmatpush1.msra.mxu0 0.0
        %1014 = vmatprep.mubr.f32.mxu0 0.0
        %1015 = vmatmul.mubr.f32.gmra.mrb[0].mxu0 %v743
        %v1016 = vpop.f32.mrb[0].mxu0
        %v1017 = vadd.f32 0.0, %v1016
        %v1018 = vpop.f32.mrb[0].mxu0
        %1019 = vmatprep.mubr.f32.mxu0 0.0
        %1020 = vmatmul.mubr.f32.gmra.mrb[0].mxu0 %v746
        %v1021 = vpop.f32.mrb[0].mxu0
        %v1022 = vadd.f32 0.0, %v1021
        %v1023 = vpop.f32.mrb[0].mxu0
        %1024 = vmatprep.mubr.f32.mxu0 0.0
        %1025 = vmatmul.mubr.f32.gmra.mrb[0].mxu0 %v749
        %v1026 = vpop.f32.mrb[0].mxu0
        %v1027 = vadd.f32 0.0, %v1026
        %v1028 = vpop.f32.mrb[0].mxu0
        %1029 = vmatprep.mubr.f32.mxu0 0.0
        %1030 = vmatmul.mubr.f32.gmra.mrb[0].mxu0 %v752
        %v1031 = vpop.f32.mrb[0].mxu0
        %v1032 = vadd.f32 0.0, %v1031
        %v1033 = vpop.f32.mrb[0].mxu0
        %1034 = vmatprep.mubr.f32.mxu0 0.0
        %1035 = vmatmul.mubr.f32.gmra.mrb[0].mxu0 %v755
        %v1036 = vpop.f32.mrb[0].mxu0
        %v1037 = vadd.f32 0.0, %v1036
        %v1038 = vpop.f32.mrb[0].mxu0
        %1039 = vmatprep.mubr.f32.mxu0 0.0
        %1040 = vmatmul.mubr.f32.gmra.mrb[0].mxu0 %v758
        %v1041 = vpop.f32.mrb[0].mxu0
        %v1042 = vadd.f32 0.0, %v1041
        %v1043 = vpop.f32.mrb[0].mxu0
        %1044 = vdwg.mxu0
        %1045 = vmatprep.subr.mxu0 0.0
        %1046 = vmatpush1.msra.mxu0 %v587
        %1047 = vmatprep.subr.mxu0 0.0
        %1048 = vmatpush1.msra.mxu0 %v592
        %1049 = vmatprep.subr.mxu0 0.0
        %1050 = vmatpush1.msra.mxu0 %v597
        %1051 = vmatprep.subr.mxu0 0.0
        %1052 = vmatpush1.msra.mxu0 %v602
        %1053 = vmatprep.subr.mxu0 0.0
        %1054 = vmatpush1.msra.mxu0 %v607
        %1055 = vmatprep.subr.mxu0 0.0
        %1056 = vmatpush1.msra.mxu0 %v612
        %1057 = vmatprep.subr.mxu0 0.0
        %1058 = vmatpush1.msra.mxu0 0.0
        %1059 = vmatprep.subr.mxu0 0.0
        %1060 = vmatpush1.msra.mxu0 0.0
        %1061 = vmatprep.subr.mxu0 0.0
        %1062 = vmatpush1.msra.mxu0 0.0
        %1063 = vmatprep.subr.mxu0 0.0
        %1064 = vmatpush1.msra.mxu0 0.0
        %1065 = vmatprep.subr.mxu0 0.0
        %1066 = vmatpush1.msra.mxu0 0.0
        %1067 = vmatprep.subr.mxu0 0.0
        %1068 = vmatpush1.msra.mxu0 0.0
        %1069 = vmatprep.subr.mxu0 0.0
        %1070 = vmatpush1.msra.mxu0 0.0
        %1071 = vmatprep.subr.mxu0 0.0
        %1072 = vmatpush1.msra.mxu0 0.0
        %1073 = vmatprep.subr.mxu0 0.0
        %1074 = vmatpush1.msra.mxu0 0.0
        %1075 = vmatprep.subr.mxu0 0.0
        %1076 = vmatpush1.msra.mxu0 0.0
        %1077 = vmatprep.subr.mxu0 0.0
        %1078 = vmatpush1.msra.mxu0 0.0
        %1079 = vmatprep.subr.mxu0 0.0
        %1080 = vmatpush1.msra.mxu0 0.0
        %1081 = vmatprep.subr.mxu0 0.0
        %1082 = vmatpush1.msra.mxu0 0.0
        %1083 = vmatprep.subr.mxu0 0.0
        %1084 = vmatpush1.msra.mxu0 0.0
        %1085 = vmatprep.subr.mxu0 0.0
        %1086 = vmatpush1.msra.mxu0 0.0
        %1087 = vmatprep.subr.mxu0 0.0
        %1088 = vmatpush1.msra.mxu0 0.0
        %1089 = vmatprep.subr.mxu0 0.0
        %1090 = vmatpush1.msra.mxu0 0.0
        %1091 = vmatprep.subr.mxu0 0.0
        %1092 = vmatpush1.msra.mxu0 0.0
        %1093 = vmatprep.subr.mxu0 0.0
        %1094 = vmatpush1.msra.mxu0 0.0
        %1095 = vmatprep.subr.mxu0 0.0
        %1096 = vmatpush1.msra.mxu0 0.0
        %1097 = vmatprep.subr.mxu0 0.0
        %1098 = vmatpush1.msra.mxu0 0.0
        %1099 = vmatprep.subr.mxu0 0.0
        %1100 = vmatpush1.msra.mxu0 0.0
        %1101 = vmatprep.subr.mxu0 0.0
        %1102 = vmatpush1.msra.mxu0 0.0
        %1103 = vmatprep.subr.mxu0 0.0
        %1104 = vmatpush1.msra.mxu0 0.0
        %1105 = vmatprep.subr.mxu0 0.0
        %1106 = vmatpush1.msra.mxu0 0.0
        %1107 = vmatprep.subr.mxu0 0.0
        %1108 = vmatpush1.msra.mxu0 0.0
        %1109 = vmatprep.mubr.f32.mxu0 0.0
        %1110 = vmatmul.mubr.f32.gmra.mrb[0].mxu0 %v743
        %v1111 = vpop.f32.mrb[0].mxu0
        %v1112 = vadd.f32 0.0, %v1111
        %v1113 = vpop.f32.mrb[0].mxu0
        %1114 = vmatprep.mubr.f32.mxu0 0.0
        %1115 = vmatmul.mubr.f32.gmra.mrb[0].mxu0 %v746
        %v1116 = vpop.f32.mrb[0].mxu0
        %v1117 = vadd.f32 0.0, %v1116
        %v1118 = vpop.f32.mrb[0].mxu0
        %1119 = vmatprep.mubr.f32.mxu0 0.0
        %1120 = vmatmul.mubr.f32.gmra.mrb[0].mxu0 %v749
        %v1121 = vpop.f32.mrb[0].mxu0
        %v1122 = vadd.f32 0.0, %v1121
        %v1123 = vpop.f32.mrb[0].mxu0
        %1124 = vmatprep.mubr.f32.mxu0 0.0
        %1125 = vmatmul.mubr.f32.gmra.mrb[0].mxu0 %v752
        %v1126 = vpop.f32.mrb[0].mxu0
        %v1127 = vadd.f32 0.0, %v1126
        %v1128 = vpop.f32.mrb[0].mxu0
        %1129 = vmatprep.mubr.f32.mxu0 0.0
        %1130 = vmatmul.mubr.f32.gmra.mrb[0].mxu0 %v755
        %v1131 = vpop.f32.mrb[0].mxu0
        %v1132 = vadd.f32 0.0, %v1131
        %v1133 = vpop.f32.mrb[0].mxu0
        %1134 = vmatprep.mubr.f32.mxu0 0.0
        %1135 = vmatmul.mubr.f32.gmra.mrb[0].mxu0 %v758
        %v1136 = vpop.f32.mrb[0].mxu0
        %v1137 = vadd.f32 0.0, %v1136
        %v1138 = vpop.f32.mrb[0].mxu0
        %1139 = vdwg.mxu0
        %1140 = vmatprep.subr.mxu0 0.0
        %1141 = vmatpush1.msra.mxu0 %v617
        %1142 = vmatprep.subr.mxu0 0.0
        %1143 = vmatpush1.msra.mxu0 %v622
        %1144 = vmatprep.subr.mxu0 0.0
        %1145 = vmatpush1.msra.mxu0 %v627
        %1146 = vmatprep.subr.mxu0 0.0
        %1147 = vmatpush1.msra.mxu0 %v632
        %1148 = vmatprep.subr.mxu0 0.0
        %1149 = vmatpush1.msra.mxu0 %v637
        %1150 = vmatprep.subr.mxu0 0.0
        %1151 = vmatpush1.msra.mxu0 %v642
        %1152 = vmatprep.subr.mxu0 0.0
        %1153 = vmatpush1.msra.mxu0 0.0
        %1154 = vmatprep.subr.mxu0 0.0
        %1155 = vmatpush1.msra.mxu0 0.0
        %1156 = vmatprep.subr.mxu0 0.0
        %1157 = vmatpush1.msra.mxu0 0.0
        %1158 = vmatprep.subr.mxu0 0.0
        %1159 = vmatpush1.msra.mxu0 0.0
        %1160 = vmatprep.subr.mxu0 0.0
        %1161 = vmatpush1.msra.mxu0 0.0
        %1162 = vmatprep.subr.mxu0 0.0
        %1163 = vmatpush1.msra.mxu0 0.0
        %1164 = vmatprep.subr.mxu0 0.0
        %1165 = vmatpush1.msra.mxu0 0.0
        %1166 = vmatprep.subr.mxu0 0.0
        %1167 = vmatpush1.msra.mxu0 0.0
        %1168 = vmatprep.subr.mxu0 0.0
        %1169 = vmatpush1.msra.mxu0 0.0
        %1170 = vmatprep.subr.mxu0 0.0
        %1171 = vmatpush1.msra.mxu0 0.0
        %1172 = vmatprep.subr.mxu0 0.0
        %1173 = vmatpush1.msra.mxu0 0.0
        %1174 = vmatprep.subr.mxu0 0.0
        %1175 = vmatpush1.msra.mxu0 0.0
        %1176 = vmatprep.subr.mxu0 0.0
        %1177 = vmatpush1.msra.mxu0 0.0
        %1178 = vmatprep.subr.mxu0 0.0
        %1179 = vmatpush1.msra.mxu0 0.0
        %1180 = vmatprep.subr.mxu0 0.0
        %1181 = vmatpush1.msra.mxu0 0.0
        %1182 = vmatprep.subr.mxu0 0.0
        %1183 = vmatpush1.msra.mxu0 0.0
        %1184 = vmatprep.subr.mxu0 0.0
        %1185 = vmatpush1.msra.mxu0 0.0
        %1186 = vmatprep.subr.mxu0 0.0
        %1187 = vmatpush1.msra.mxu0 0.0
        %1188 = vmatprep.subr.mxu0 0.0
        %1189 = vmatpush1.msra.mxu0 0.0
        %1190 = vmatprep.subr.mxu0 0.0
        %1191 = vmatpush1.msra.mxu0 0.0
        %1192 = vmatprep.subr.mxu0 0.0
        %1193 = vmatpush1.msra.mxu0 0.0
        %1194 = vmatprep.subr.mxu0 0.0
        %1195 = vmatpush1.msra.mxu0 0.0
        %1196 = vmatprep.subr.mxu0 0.0
        %1197 = vmatpush1.msra.mxu0 0.0
        %1198 = vmatprep.subr.mxu0 0.0
        %1199 = vmatpush1.msra.mxu0 0.0
        %1200 = vmatprep.subr.mxu0 0.0
        %1201 = vmatpush1.msra.mxu0 0.0
        %1202 = vmatprep.subr.mxu0 0.0
        %1203 = vmatpush1.msra.mxu0 0.0
        %1204 = vmatprep.mubr.f32.mxu0 0.0
        %1205 = vmatmul.mubr.f32.gmra.mrb[0].mxu0 %v743
        %v1206 = vpop.f32.mrb[0].mxu0
        %v1207 = vadd.f32 0.0, %v1206
        %v1208 = vpop.f32.mrb[0].mxu0
        %1209 = vmatprep.mubr.f32.mxu0 0.0
        %1210 = vmatmul.mubr.f32.gmra.mrb[0].mxu0 %v746
        %v1211 = vpop.f32.mrb[0].mxu0
        %v1212 = vadd.f32 0.0, %v1211
        %v1213 = vpop.f32.mrb[0].mxu0
        %1214 = vmatprep.mubr.f32.mxu0 0.0
        %1215 = vmatmul.mubr.f32.gmra.mrb[0].mxu0 %v749
        %v1216 = vpop.f32.mrb[0].mxu0
        %v1217 = vadd.f32 0.0, %v1216
        %v1218 = vpop.f32.mrb[0].mxu0
        %1219 = vmatprep.mubr.f32.mxu0 0.0
        %1220 = vmatmul.mubr.f32.gmra.mrb[0].mxu0 %v752
        %v1221 = vpop.f32.mrb[0].mxu0
        %v1222 = vadd.f32 0.0, %v1221
        %v1223 = vpop.f32.mrb[0].mxu0
        %1224 = vmatprep.mubr.f32.mxu0 0.0
        %1225 = vmatmul.mubr.f32.gmra.mrb[0].mxu0 %v755
        %v1226 = vpop.f32.mrb[0].mxu0
        %v1227 = vadd.f32 0.0, %v1226
        %v1228 = vpop.f32.mrb[0].mxu0
        %1229 = vmatprep.mubr.f32.mxu0 0.0
        %1230 = vmatmul.mubr.f32.gmra.mrb[0].mxu0 %v758
        %v1231 = vpop.f32.mrb[0].mxu0
        %v1232 = vadd.f32 0.0, %v1231
        %v1233 = vpop.f32.mrb[0].mxu0
        %1234 = vdwg.mxu0
        %1235 = vmatprep.subr.mxu0 0.0
        %1236 = vmatpush1.msra.mxu0 %v647
        %1237 = vmatprep.subr.mxu0 0.0
        %1238 = vmatpush1.msra.mxu0 %v652
        %1239 = vmatprep.subr.mxu0 0.0
        %1240 = vmatpush1.msra.mxu0 %v657
        %1241 = vmatprep.subr.mxu0 0.0
        %1242 = vmatpush1.msra.mxu0 %v662
        %1243 = vmatprep.subr.mxu0 0.0
        %1244 = vmatpush1.msra.mxu0 %v667
        %1245 = vmatprep.subr.mxu0 0.0
        %1246 = vmatpush1.msra.mxu0 %v672
        %1247 = vmatprep.subr.mxu0 0.0
        %1248 = vmatpush1.msra.mxu0 0.0
        %1249 = vmatprep.subr.mxu0 0.0
        %1250 = vmatpush1.msra.mxu0 0.0
        %1251 = vmatprep.subr.mxu0 0.0
        %1252 = vmatpush1.msra.mxu0 0.0
        %1253 = vmatprep.subr.mxu0 0.0
        %1254 = vmatpush1.msra.mxu0 0.0
        %1255 = vmatprep.subr.mxu0 0.0
        %1256 = vmatpush1.msra.mxu0 0.0
        %1257 = vmatprep.subr.mxu0 0.0
        %1258 = vmatpush1.msra.mxu0 0.0
        %1259 = vmatprep.subr.mxu0 0.0
        %1260 = vmatpush1.msra.mxu0 0.0
        %1261 = vmatprep.subr.mxu0 0.0
        %1262 = vmatpush1.msra.mxu0 0.0
        %1263 = vmatprep.subr.mxu0 0.0
        %1264 = vmatpush1.msra.mxu0 0.0
        %1265 = vmatprep.subr.mxu0 0.0
        %1266 = vmatpush1.msra.mxu0 0.0
        %1267 = vmatprep.subr.mxu0 0.0
        %1268 = vmatpush1.msra.mxu0 0.0
        %1269 = vmatprep.subr.mxu0 0.0
        %1270 = vmatpush1.msra.mxu0 0.0
        %1271 = vmatprep.subr.mxu0 0.0
        %1272 = vmatpush1.msra.mxu0 0.0
        %1273 = vmatprep.subr.mxu0 0.0
        %1274 = vmatpush1.msra.mxu0 0.0
        %1275 = vmatprep.subr.mxu0 0.0
        %1276 = vmatpush1.msra.mxu0 0.0
        %1277 = vmatprep.subr.mxu0 0.0
        %1278 = vmatpush1.msra.mxu0 0.0
        %1279 = vmatprep.subr.mxu0 0.0
        %1280 = vmatpush1.msra.mxu0 0.0
        %1281 = vmatprep.subr.mxu0 0.0
        %1282 = vmatpush1.msra.mxu0 0.0
        %1283 = vmatprep.subr.mxu0 0.0
        %1284 = vmatpush1.msra.mxu0 0.0
        %1285 = vmatprep.subr.mxu0 0.0
        %1286 = vmatpush1.msra.mxu0 0.0
        %1287 = vmatprep.subr.mxu0 0.0
        %1288 = vmatpush1.msra.mxu0 0.0
        %1289 = vmatprep.subr.mxu0 0.0
        %1290 = vmatpush1.msra.mxu0 0.0
        %1291 = vmatprep.subr.mxu0 0.0
        %1292 = vmatpush1.msra.mxu0 0.0
        %1293 = vmatprep.subr.mxu0 0.0
        %1294 = vmatpush1.msra.mxu0 0.0
        %1295 = vmatprep.subr.mxu0 0.0
        %1296 = vmatpush1.msra.mxu0 0.0
        %1297 = vmatprep.subr.mxu0 0.0
        %1298 = vmatpush1.msra.mxu0 0.0
        %1299 = vmatprep.mubr.f32.mxu0 0.0
        %1300 = vmatmul.mubr.f32.gmra.mrb[0].mxu0 %v743
        %v1301 = vpop.f32.mrb[0].mxu0
        %v1302 = vadd.f32 0.0, %v1301
        %v1303 = vpop.f32.mrb[0].mxu0
        %1304 = vmatprep.mubr.f32.mxu0 0.0
        %1305 = vmatmul.mubr.f32.gmra.mrb[0].mxu0 %v746
        %v1306 = vpop.f32.mrb[0].mxu0
        %v1307 = vadd.f32 0.0, %v1306
        %v1308 = vpop.f32.mrb[0].mxu0
        %1309 = vmatprep.mubr.f32.mxu0 0.0
        %1310 = vmatmul.mubr.f32.gmra.mrb[0].mxu0 %v749
        %v1311 = vpop.f32.mrb[0].mxu0
        %v1312 = vadd.f32 0.0, %v1311
        %v1313 = vpop.f32.mrb[0].mxu0
        %1314 = vmatprep.mubr.f32.mxu0 0.0
        %1315 = vmatmul.mubr.f32.gmra.mrb[0].mxu0 %v752
        %v1316 = vpop.f32.mrb[0].mxu0
        %v1317 = vadd.f32 0.0, %v1316
        %v1318 = vpop.f32.mrb[0].mxu0
        %1319 = vmatprep.mubr.f32.mxu0 0.0
        %1320 = vmatmul.mubr.f32.gmra.mrb[0].mxu0 %v755
        %v1321 = vpop.f32.mrb[0].mxu0
        %v1322 = vadd.f32 0.0, %v1321
        %v1323 = vpop.f32.mrb[0].mxu0
        %1324 = vmatprep.mubr.f32.mxu0 0.0
        %1325 = vmatmul.mubr.f32.gmra.mrb[0].mxu0 %v758
        %v1326 = vpop.f32.mrb[0].mxu0
        %v1327 = vadd.f32 0.0, %v1326
        %v1328 = vpop.f32.mrb[0].mxu0
        %1329 = vdwg.mxu0
        %1330 = vmatprep.subr.mxu0 0.0
        %1331 = vmatpush1.msra.mxu0 %v677
        %1332 = vmatprep.subr.mxu0 0.0
        %1333 = vmatpush1.msra.mxu0 %v682
        %1334 = vmatprep.subr.mxu0 0.0
        %1335 = vmatpush1.msra.mxu0 %v687
        %1336 = vmatprep.subr.mxu0 0.0
        %1337 = vmatpush1.msra.mxu0 %v692
        %1338 = vmatprep.subr.mxu0 0.0
        %1339 = vmatpush1.msra.mxu0 %v697
        %1340 = vmatprep.subr.mxu0 0.0
        %1341 = vmatpush1.msra.mxu0 %v702
        %1342 = vmatprep.subr.mxu0 0.0
        %1343 = vmatpush1.msra.mxu0 0.0
        %1344 = vmatprep.subr.mxu0 0.0
        %1345 = vmatpush1.msra.mxu0 0.0
        %1346 = vmatprep.subr.mxu0 0.0
        %1347 = vmatpush1.msra.mxu0 0.0
        %1348 = vmatprep.subr.mxu0 0.0
        %1349 = vmatpush1.msra.mxu0 0.0
        %1350 = vmatprep.subr.mxu0 0.0
        %1351 = vmatpush1.msra.mxu0 0.0
        %1352 = vmatprep.subr.mxu0 0.0
        %1353 = vmatpush1.msra.mxu0 0.0
        %1354 = vmatprep.subr.mxu0 0.0
        %1355 = vmatpush1.msra.mxu0 0.0
        %1356 = vmatprep.subr.mxu0 0.0
        %1357 = vmatpush1.msra.mxu0 0.0
        %1358 = vmatprep.subr.mxu0 0.0
        %1359 = vmatpush1.msra.mxu0 0.0
        %1360 = vmatprep.subr.mxu0 0.0
        %1361 = vmatpush1.msra.mxu0 0.0
        %1362 = vmatprep.subr.mxu0 0.0
        %1363 = vmatpush1.msra.mxu0 0.0
        %1364 = vmatprep.subr.mxu0 0.0
        %1365 = vmatpush1.msra.mxu0 0.0
        %1366 = vmatprep.subr.mxu0 0.0
        %1367 = vmatpush1.msra.mxu0 0.0
        %1368 = vmatprep.subr.mxu0 0.0
        %1369 = vmatpush1.msra.mxu0 0.0
        %1370 = vmatprep.subr.mxu0 0.0
        %1371 = vmatpush1.msra.mxu0 0.0
        %1372 = vmatprep.subr.mxu0 0.0
        %1373 = vmatpush1.msra.mxu0 0.0
        %1374 = vmatprep.subr.mxu0 0.0
        %1375 = vmatpush1.msra.mxu0 0.0
        %1376 = vmatprep.subr.mxu0 0.0
        %1377 = vmatpush1.msra.mxu0 0.0
        %1378 = vmatprep.subr.mxu0 0.0
        %1379 = vmatpush1.msra.mxu0 0.0
        %1380 = vmatprep.subr.mxu0 0.0
        %1381 = vmatpush1.msra.mxu0 0.0
        %1382 = vmatprep.subr.mxu0 0.0
        %1383 = vmatpush1.msra.mxu0 0.0
        %1384 = vmatprep.subr.mxu0 0.0
        %1385 = vmatpush1.msra.mxu0 0.0
        %1386 = vmatprep.subr.mxu0 0.0
        %1387 = vmatpush1.msra.mxu0 0.0
        %1388 = vmatprep.subr.mxu0 0.0
        %1389 = vmatpush1.msra.mxu0 0.0
        %1390 = vmatprep.subr.mxu0 0.0
        %1391 = vmatpush1.msra.mxu0 0.0
        %1392 = vmatprep.subr.mxu0 0.0
        %1393 = vmatpush1.msra.mxu0 0.0
        %1394 = vmatprep.mubr.f32.mxu0 0.0
        %1395 = vmatmul.mubr.f32.gmra.mrb[0].mxu0 %v743
        %v1396 = vpop.f32.mrb[0].mxu0
        %v1397 = vadd.f32 0.0, %v1396
        %v1398 = vpop.f32.mrb[0].mxu0
        %1399 = vmatprep.mubr.f32.mxu0 0.0
        %1400 = vmatmul.mubr.f32.gmra.mrb[0].mxu0 %v746
        %v1401 = vpop.f32.mrb[0].mxu0
        %v1402 = vadd.f32 0.0, %v1401
        %v1403 = vpop.f32.mrb[0].mxu0
        %1404 = vmatprep.mubr.f32.mxu0 0.0
        %1405 = vmatmul.mubr.f32.gmra.mrb[0].mxu0 %v749
        %v1406 = vpop.f32.mrb[0].mxu0
        %v1407 = vadd.f32 0.0, %v1406
        %v1408 = vpop.f32.mrb[0].mxu0
        %1409 = vmatprep.mubr.f32.mxu0 0.0
        %1410 = vmatmul.mubr.f32.gmra.mrb[0].mxu0 %v752
        %v1411 = vpop.f32.mrb[0].mxu0
        %v1412 = vadd.f32 0.0, %v1411
        %v1413 = vpop.f32.mrb[0].mxu0
        %1414 = vmatprep.mubr.f32.mxu0 0.0
        %1415 = vmatmul.mubr.f32.gmra.mrb[0].mxu0 %v755
        %v1416 = vpop.f32.mrb[0].mxu0
        %v1417 = vadd.f32 0.0, %v1416
        %v1418 = vpop.f32.mrb[0].mxu0
        %1419 = vmatprep.mubr.f32.mxu0 0.0
        %1420 = vmatmul.mubr.f32.gmra.mrb[0].mxu0 %v758
        %v1421 = vpop.f32.mrb[0].mxu0
        %v1422 = vadd.f32 0.0, %v1421
        %v1423 = vpop.f32.mrb[0].mxu0
        %1424 = vdwg.mxu0
        %1425 = vmatprep.subr.mxu0 0.0
        %1426 = vmatpush1.msra.mxu0 %v707
        %1427 = vmatprep.subr.mxu0 0.0
        %1428 = vmatpush1.msra.mxu0 %v712
        %1429 = vmatprep.subr.mxu0 0.0
        %1430 = vmatpush1.msra.mxu0 %v717
        %1431 = vmatprep.subr.mxu0 0.0
        %1432 = vmatpush1.msra.mxu0 %v722
        %1433 = vmatprep.subr.mxu0 0.0
        %1434 = vmatpush1.msra.mxu0 %v727
        %1435 = vmatprep.subr.mxu0 0.0
        %1436 = vmatpush1.msra.mxu0 %v732
        %1437 = vmatprep.subr.mxu0 0.0
        %1438 = vmatpush1.msra.mxu0 0.0
        %1439 = vmatprep.subr.mxu0 0.0
        %1440 = vmatpush1.msra.mxu0 0.0
        %1441 = vmatprep.subr.mxu0 0.0
        %1442 = vmatpush1.msra.mxu0 0.0
        %1443 = vmatprep.subr.mxu0 0.0
        %1444 = vmatpush1.msra.mxu0 0.0
        %1445 = vmatprep.subr.mxu0 0.0
        %1446 = vmatpush1.msra.mxu0 0.0
        %1447 = vmatprep.subr.mxu0 0.0
        %1448 = vmatpush1.msra.mxu0 0.0
        %1449 = vmatprep.subr.mxu0 0.0
        %1450 = vmatpush1.msra.mxu0 0.0
        %1451 = vmatprep.subr.mxu0 0.0
        %1452 = vmatpush1.msra.mxu0 0.0
        %1453 = vmatprep.subr.mxu0 0.0
        %1454 = vmatpush1.msra.mxu0 0.0
        %1455 = vmatprep.subr.mxu0 0.0
        %1456 = vmatpush1.msra.mxu0 0.0
        %1457 = vmatprep.subr.mxu0 0.0
        %1458 = vmatpush1.msra.mxu0 0.0
        %1459 = vmatprep.subr.mxu0 0.0
        %1460 = vmatpush1.msra.mxu0 0.0
        %1461 = vmatprep.subr.mxu0 0.0
        %1462 = vmatpush1.msra.mxu0 0.0
        %1463 = vmatprep.subr.mxu0 0.0
        %1464 = vmatpush1.msra.mxu0 0.0
        %1465 = vmatprep.subr.mxu0 0.0
        %1466 = vmatpush1.msra.mxu0 0.0
        %1467 = vmatprep.subr.mxu0 0.0
        %1468 = vmatpush1.msra.mxu0 0.0
        %1469 = vmatprep.subr.mxu0 0.0
        %1470 = vmatpush1.msra.mxu0 0.0
        %1471 = vmatprep.subr.mxu0 0.0
        %1472 = vmatpush1.msra.mxu0 0.0
        %1473 = vmatprep.subr.mxu0 0.0
        %1474 = vmatpush1.msra.mxu0 0.0
        %1475 = vmatprep.subr.mxu0 0.0
        %1476 = vmatpush1.msra.mxu0 0.0
        %1477 = vmatprep.subr.mxu0 0.0
        %1478 = vmatpush1.msra.mxu0 0.0
        %1479 = vmatprep.subr.mxu0 0.0
        %1480 = vmatpush1.msra.mxu0 0.0
        %1481 = vmatprep.subr.mxu0 0.0
        %1482 = vmatpush1.msra.mxu0 0.0
        %1483 = vmatprep.subr.mxu0 0.0
        %1484 = vmatpush1.msra.mxu0 0.0
        %1485 = vmatprep.subr.mxu0 0.0
        %1486 = vmatpush1.msra.mxu0 0.0
        %1487 = vmatprep.subr.mxu0 0.0
        %1488 = vmatpush1.msra.mxu0 0.0
        %1489 = vmatprep.mubr.f32.mxu0 0.0
        %1490 = vmatmul.mubr.f32.gmra.mrb[0].mxu0 %v743
        %v1491 = vpop.f32.mrb[0].mxu0
        %v1492 = vadd.f32 0.0, %v1491
        %v1493 = vpop.f32.mrb[0].mxu0
        %1494 = vmatprep.mubr.f32.mxu0 0.0
        %1495 = vmatmul.mubr.f32.gmra.mrb[0].mxu0 %v746
        %v1496 = vpop.f32.mrb[0].mxu0
        %v1497 = vadd.f32 0.0, %v1496
        %v1498 = vpop.f32.mrb[0].mxu0
        %1499 = vmatprep.mubr.f32.mxu0 0.0
        %1500 = vmatmul.mubr.f32.gmra.mrb[0].mxu0 %v749
        %v1501 = vpop.f32.mrb[0].mxu0
        %v1502 = vadd.f32 0.0, %v1501
        %v1503 = vpop.f32.mrb[0].mxu0
        %1504 = vmatprep.mubr.f32.mxu0 0.0
        %1505 = vmatmul.mubr.f32.gmra.mrb[0].mxu0 %v752
        %v1506 = vpop.f32.mrb[0].mxu0
        %v1507 = vadd.f32 0.0, %v1506
        %v1508 = vpop.f32.mrb[0].mxu0
        %1509 = vmatprep.mubr.f32.mxu0 0.0
        %1510 = vmatmul.mubr.f32.gmra.mrb[0].mxu0 %v755
        %v1511 = vpop.f32.mrb[0].mxu0
        %v1512 = vadd.f32 0.0, %v1511
        %v1513 = vpop.f32.mrb[0].mxu0
        %1514 = vmatprep.mubr.f32.mxu0 0.0
        %1515 = vmatmul.mubr.f32.gmra.mrb[0].mxu0 %v758
        %v1516 = vpop.f32.mrb[0].mxu0
        %v1517 = vadd.f32 0.0, %v1516
        %v1518 = vpop.f32.mrb[0].mxu0
        %1519 = vdwg.mxu0
        %1520 = vst.msk [vmem:[%s212] sm:$0xff] %vm285, %v827
        %1521 = vst.msk [vmem:[%s212 + $0x8] sm:$0xff] %vm285, %v832
        %1522 = vst.msk [vmem:[%s212 + $0x10] sm:$0xff] %vm285, %v837
        %1523 = vst.msk [vmem:[%s212 + $0x18] sm:$0xff] %vm285, %v842
        %1524 = vst.msk [vmem:[%s212 + $0x20] sm:$0xff] %vm285, %v847
        %1525 = vst.msk [vmem:[%s212 + $0x28] sm:$0xff] %vm285, %v852
        %1526 = vst.msk [vmem:[%s212 + $0x30] sm:$0xff] %vm285, %v922
        %1527 = vst.msk [vmem:[%s212 + $0x38] sm:$0xff] %vm285, %v927
        %1528 = vst.msk [vmem:[%s212 + $0x40] sm:$0xff] %vm285, %v932
        %1529 = vst.msk [vmem:[%s212 + $0x48] sm:$0xff] %vm285, %v937
        %1530 = vst.msk [vmem:[%s212 + $0x50] sm:$0xff] %vm285, %v942
        %1531 = vst.msk [vmem:[%s212 + $0x58] sm:$0xff] %vm285, %v947
        %1532 = vst.msk [vmem:[%s212 + $0x60] sm:$0xff] %vm285, %v1017
        %1533 = vst.msk [vmem:[%s212 + $0x68] sm:$0xff] %vm285, %v1022
        %1534 = vst.msk [vmem:[%s212 + $0x70] sm:$0xff] %vm285, %v1027
        %1535 = vst.msk [vmem:[%s212 + $0x78] sm:$0xff] %vm285, %v1032
        %1536 = vst.msk [vmem:[%s212 + $0x80] sm:$0xff] %vm285, %v1037
        %1537 = vst.msk [vmem:[%s212 + $0x88] sm:$0xff] %vm285, %v1042
        %1538 = vst.msk [vmem:[%s212 + $0x90] sm:$0xff] %vm285, %v1112
        %1539 = vst.msk [vmem:[%s212 + $0x98] sm:$0xff] %vm285, %v1117
        %1540 = vst.msk [vmem:[%s212 + $0xa0] sm:$0xff] %vm285, %v1122
        %1541 = vst.msk [vmem:[%s212 + $0xa8] sm:$0xff] %vm285, %v1127
        %1542 = vst.msk [vmem:[%s212 + $0xb0] sm:$0xff] %vm285, %v1132
        %1543 = vst.msk [vmem:[%s212 + $0xb8] sm:$0xff] %vm285, %v1137
        %1544 = vst.msk [vmem:[%s212 + $0xc0] sm:$0xff] %vm285, %v1207
        %1545 = vst.msk [vmem:[%s212 + $0xc8] sm:$0xff] %vm285, %v1212
        %1546 = vst.msk [vmem:[%s212 + $0xd0] sm:$0xff] %vm285, %v1217
        %1547 = vst.msk [vmem:[%s212 + $0xd8] sm:$0xff] %vm285, %v1222
        %1548 = vst.msk [vmem:[%s212 + $0xe0] sm:$0xff] %vm285, %v1227
        %1549 = vst.msk [vmem:[%s212 + $0xe8] sm:$0xff] %vm285, %v1232
        %1550 = vst.msk [vmem:[%s212 + $0xf0] sm:$0xff] %vm285, %v1302
        %1551 = vst.msk [vmem:[%s212 + $0xf8] sm:$0xff] %vm285, %v1307
        %1552 = vst.msk [vmem:[%s212 + $0x100] sm:$0xff] %vm285, %v1312
        %1553 = vst.msk [vmem:[%s212 + $0x108] sm:$0xff] %vm285, %v1317
        %1554 = vst.msk [vmem:[%s212 + $0x110] sm:$0xff] %vm285, %v1322
        %1555 = vst.msk [vmem:[%s212 + $0x118] sm:$0xff] %vm285, %v1327
        %1556 = vst.msk [vmem:[%s212 + $0x120] sm:$0xff] %vm285, %v1397
        %1557 = vst.msk [vmem:[%s212 + $0x128] sm:$0xff] %vm285, %v1402
        %1558 = vst.msk [vmem:[%s212 + $0x130] sm:$0xff] %vm285, %v1407
        %1559 = vst.msk [vmem:[%s212 + $0x138] sm:$0xff] %vm285, %v1412
        %1560 = vst.msk [vmem:[%s212 + $0x140] sm:$0xff] %vm285, %v1417
        %1561 = vst.msk [vmem:[%s212 + $0x148] sm:$0xff] %vm285, %v1422
        %1562 = vst.msk [vmem:[%s212 + $0x150] sm:$0xff] %vm285, %v1492
        %1563 = vst.msk [vmem:[%s212 + $0x158] sm:$0xff] %vm285, %v1497
        %1564 = vst.msk [vmem:[%s212 + $0x160] sm:$0xff] %vm285, %v1502
        %1565 = vst.msk [vmem:[%s212 + $0x168] sm:$0xff] %vm285, %v1507
        %1566 = vst.msk [vmem:[%s212 + $0x170] sm:$0xff] %vm285, %v1512
        %1567 = vst.msk [vmem:[%s212 + $0x178] sm:$0xff] %vm285, %v1517
        %s1568 = sand.u32 %s122, 1
        %s1569 = sand.u32 %s122, 1
        %s1570 = smul.addr %s1569, 384
        %s1571 = scalar_lea.vmem [#allocation2], %s1570
        // Predicated region
        $region37: #{graph_operate.1} parent=35 // pred_check
          %p1572 = pneg %p132
        $region38: #{graph_operate.1} parent=35 // pred_check_branch
          %1574 = sbr.rel (%p1572) target = $region40
        $region39: #{graph_operate.1} parent=35 // pred_region
          %s1575 = smul.addr %s15, 6
          %s1576 = smul.addr %s1575, 8
          %s1577 = scalar_lea.vmem %s4, %s1576
          // Predicated region
          $region41: #{graph_operate.1} parent=39 // pred_check
            _
          $region42: #{graph_operate.1} parent=39 // pred_check_branch
            %1579 = sbr.rel (0) target = $region44
          $region43: #{graph_operate.1} parent=39 // pred_region
            // Predicated region
            $region45: #{graph_operate.1} parent=43 // pred_check
              _
            $region46: #{graph_operate.1} parent=43 // pred_check_branch
              %1581 = sbr.rel (0) target = $region48
            $region47: #{graph_operate.1} parent=43 // pred_region
              // Predicated region
              $region60: #{graph_operate.1} parent=47 // pred_check
                _
              $region61: #{graph_operate.1} parent=47 // pred_check_branch
                %1690 = sbr.rel (0) target = $region63
              $region62: #{graph_operate.1} parent=47 // pred_region
                loop: start=0, step=1, limit=1
                $region64: #{graph_operate.1} parent=62 // loop_pre_header
                  _
                $region65: #{graph_operate.1} parent=62 // loop_header
                  %s1692 = sphi 0, %s1696
                  %p1693 = scmp.ge.s32.totalorder %s1692, 1
                  %s1697 = sphi %s1571, %s1571
                  %s1698 = sphi %s1577, %s1577
                $region66: #{graph_operate.1} parent=62 // loop_header_branch
                  %1695 = sbr.rel (%p1693) target = $region70
                $region67: #{graph_operate.1} parent=62 // loop_body
                  %v1699 = vld [vmem:[%s1697] sm:$0xff]
                  %1700 = vst [vmem:[%s1698] sm:$0xff] %v1699
                  %v1701 = vld [vmem:[%s1697 + $0x8] sm:$0xff]
                  %1702 = vst [vmem:[%s1698 + $0x8] sm:$0xff] %v1701
                  %v1703 = vld [vmem:[%s1697 + $0x10] sm:$0xff]
                  %1704 = vst [vmem:[%s1698 + $0x10] sm:$0xff] %v1703
                  %v1705 = vld [vmem:[%s1697 + $0x18] sm:$0xff]
                  %1706 = vst [vmem:[%s1698 + $0x18] sm:$0xff] %v1705
                  %v1707 = vld [vmem:[%s1697 + $0x20] sm:$0xff]
                  %1708 = vst [vmem:[%s1698 + $0x20] sm:$0xff] %v1707
                  %v1709 = vld [vmem:[%s1697 + $0x28] sm:$0xff]
                  %1710 = vst [vmem:[%s1698 + $0x28] sm:$0xff] %v1709
                  %v1711 = vld [vmem:[%s1697 + $0x30] sm:$0xff]
                  %1712 = vst [vmem:[%s1698 + $0x60] sm:$0xff] %v1711
                  %v1713 = vld [vmem:[%s1697 + $0x38] sm:$0xff]
                  %1714 = vst [vmem:[%s1698 + $0x68] sm:$0xff] %v1713
                  %v1715 = vld [vmem:[%s1697 + $0x40] sm:$0xff]
                  %1716 = vst [vmem:[%s1698 + $0x70] sm:$0xff] %v1715
                  %v1717 = vld [vmem:[%s1697 + $0x48] sm:$0xff]
                  %1718 = vst [vmem:[%s1698 + $0x78] sm:$0xff] %v1717
                  %v1719 = vld [vmem:[%s1697 + $0x50] sm:$0xff]
                  %1720 = vst [vmem:[%s1698 + $0x80] sm:$0xff] %v1719
                  %v1721 = vld [vmem:[%s1697 + $0x58] sm:$0xff]
                  %1722 = vst [vmem:[%s1698 + $0x88] sm:$0xff] %v1721
                  %v1723 = vld [vmem:[%s1697 + $0x60] sm:$0xff]
                  %1724 = vst [vmem:[%s1698 + $0xc0] sm:$0xff] %v1723
                  %v1725 = vld [vmem:[%s1697 + $0x68] sm:$0xff]
                  %1726 = vst [vmem:[%s1698 + $0xc8] sm:$0xff] %v1725
                  %v1727 = vld [vmem:[%s1697 + $0x70] sm:$0xff]
                  %1728 = vst [vmem:[%s1698 + $0xd0] sm:$0xff] %v1727
                  %v1729 = vld [vmem:[%s1697 + $0x78] sm:$0xff]
                  %1730 = vst [vmem:[%s1698 + $0xd8] sm:$0xff] %v1729
                  %v1731 = vld [vmem:[%s1697 + $0x80] sm:$0xff]
                  %1732 = vst [vmem:[%s1698 + $0xe0] sm:$0xff] %v1731
                  %v1733 = vld [vmem:[%s1697 + $0x88] sm:$0xff]
                  %1734 = vst [vmem:[%s1698 + $0xe8] sm:$0xff] %v1733
                  %v1735 = vld [vmem:[%s1697 + $0x90] sm:$0xff]
                  %1736 = vst [vmem:[%s1698 + $0x120] sm:$0xff] %v1735
                  %v1737 = vld [vmem:[%s1697 + $0x98] sm:$0xff]
                  %1738 = vst [vmem:[%s1698 + $0x128] sm:$0xff] %v1737
                  %v1739 = vld [vmem:[%s1697 + $0xa0] sm:$0xff]
                  %1740 = vst [vmem:[%s1698 + $0x130] sm:$0xff] %v1739
                  %v1741 = vld [vmem:[%s1697 + $0xa8] sm:$0xff]
                  %1742 = vst [vmem:[%s1698 + $0x138] sm:$0xff] %v1741
                  %v1743 = vld [vmem:[%s1697 + $0xb0] sm:$0xff]
                  %1744 = vst [vmem:[%s1698 + $0x140] sm:$0xff] %v1743
                  %v1745 = vld [vmem:[%s1697 + $0xb8] sm:$0xff]
                  %1746 = vst [vmem:[%s1698 + $0x148] sm:$0xff] %v1745
                  %v1747 = vld [vmem:[%s1697 + $0xc0] sm:$0xff]
                  %1748 = vst [vmem:[%s1698 + $0x180] sm:$0xff] %v1747
                  %v1749 = vld [vmem:[%s1697 + $0xc8] sm:$0xff]
                  %1750 = vst [vmem:[%s1698 + $0x188] sm:$0xff] %v1749
                  %v1751 = vld [vmem:[%s1697 + $0xd0] sm:$0xff]
                  %1752 = vst [vmem:[%s1698 + $0x190] sm:$0xff] %v1751
                  %v1753 = vld [vmem:[%s1697 + $0xd8] sm:$0xff]
                  %1754 = vst [vmem:[%s1698 + $0x198] sm:$0xff] %v1753
                  %v1755 = vld [vmem:[%s1697 + $0xe0] sm:$0xff]
                  %1756 = vst [vmem:[%s1698 + $0x1a0] sm:$0xff] %v1755
                  %v1757 = vld [vmem:[%s1697 + $0xe8] sm:$0xff]
                  %1758 = vst [vmem:[%s1698 + $0x1a8] sm:$0xff] %v1757
                  %v1759 = vld [vmem:[%s1697 + $0xf0] sm:$0xff]
                  %1760 = vst [vmem:[%s1698 + $0x1e0] sm:$0xff] %v1759
                  %v1761 = vld [vmem:[%s1697 + $0xf8] sm:$0xff]
                  %1762 = vst [vmem:[%s1698 + $0x1e8] sm:$0xff] %v1761
                  %v1763 = vld [vmem:[%s1697 + $0x100] sm:$0xff]
                  %1764 = vst [vmem:[%s1698 + $0x1f0] sm:$0xff] %v1763
                  %v1765 = vld [vmem:[%s1697 + $0x108] sm:$0xff]
                  %1766 = vst [vmem:[%s1698 + $0x1f8] sm:$0xff] %v1765
                  %v1767 = vld [vmem:[%s1697 + $0x110] sm:$0xff]
                  %1768 = vst [vmem:[%s1698 + $0x200] sm:$0xff] %v1767
                  %v1769 = vld [vmem:[%s1697 + $0x118] sm:$0xff]
                  %1770 = vst [vmem:[%s1698 + $0x208] sm:$0xff] %v1769
                  %v1771 = vld [vmem:[%s1697 + $0x120] sm:$0xff]
                  %1772 = vst [vmem:[%s1698 + $0x240] sm:$0xff] %v1771
                  %v1773 = vld [vmem:[%s1697 + $0x128] sm:$0xff]
                  %1774 = vst [vmem:[%s1698 + $0x248] sm:$0xff] %v1773
                  %v1775 = vld [vmem:[%s1697 + $0x130] sm:$0xff]
                  %1776 = vst [vmem:[%s1698 + $0x250] sm:$0xff] %v1775
                  %v1777 = vld [vmem:[%s1697 + $0x138] sm:$0xff]
                  %1778 = vst [vmem:[%s1698 + $0x258] sm:$0xff] %v1777
                  %v1779 = vld [vmem:[%s1697 + $0x140] sm:$0xff]
                  %1780 = vst [vmem:[%s1698 + $0x260] sm:$0xff] %v1779
                  %v1781 = vld [vmem:[%s1697 + $0x148] sm:$0xff]
                  %1782 = vst [vmem:[%s1698 + $0x268] sm:$0xff] %v1781
                  %v1783 = vld [vmem:[%s1697 + $0x150] sm:$0xff]
                  %1784 = vst [vmem:[%s1698 + $0x2a0] sm:$0xff] %v1783
                  %v1785 = vld [vmem:[%s1697 + $0x158] sm:$0xff]
                  %1786 = vst [vmem:[%s1698 + $0x2a8] sm:$0xff] %v1785
                  %v1787 = vld [vmem:[%s1697 + $0x160] sm:$0xff]
                  %1788 = vst [vmem:[%s1698 + $0x2b0] sm:$0xff] %v1787
                  %v1789 = vld [vmem:[%s1697 + $0x168] sm:$0xff]
                  %1790 = vst [vmem:[%s1698 + $0x2b8] sm:$0xff] %v1789
                  %v1791 = vld [vmem:[%s1697 + $0x170] sm:$0xff]
                  %1792 = vst [vmem:[%s1698 + $0x2c0] sm:$0xff] %v1791
                  %v1793 = vld [vmem:[%s1697 + $0x178] sm:$0xff]
                  %1794 = vst [vmem:[%s1698 + $0x2c8] sm:$0xff] %v1793
                $region68: #{graph_operate.1} parent=62 // loop_footer
                  %s1696 = sadd.s32 1, %s1692
                $region69: #{graph_operate.1} parent=62 // loop_footer_branch
                  %1691 = sbr.rel target = $region65
                $region70: #{graph_operate.1} parent=62 // loop_exit
                  _
              $region63: #{graph_operate.1} parent=47 // pred_fallthru
                _
              // Predicated region
              $region71: #{graph_operate.1} parent=47 // pred_check
                _
              $region72: #{graph_operate.1} parent=47 // pred_check_branch
                %1796 = sbr.rel target = $region74
              $region73: #{graph_operate.1} parent=47 // pred_region
                _
              $region74: #{graph_operate.1} parent=47 // pred_fallthru
                _
            $region48: #{graph_operate.1} parent=43 // pred_fallthru
              _
            // Predicated region
            $region49: #{graph_operate.1} parent=43 // pred_check
              _
            $region50: #{graph_operate.1} parent=43 // pred_check_branch
              %1583 = sbr.rel target = $region52
            $region51: #{graph_operate.1} parent=43 // pred_region
              loop: start=0, step=1, limit=1
              $region53: #{graph_operate.1} parent=51 // loop_pre_header
                _
              $region54: #{graph_operate.1} parent=51 // loop_header
                %s1586 = sphi 0, %s1590
                %p1587 = scmp.ge.s32.totalorder %s1586, 1
                %s1591 = sphi %s1571, %s1571
                %s1592 = sphi %s1577, %s1577
              $region55: #{graph_operate.1} parent=51 // loop_header_branch
                %1589 = sbr.rel (%p1587) target = $region59
              $region56: #{graph_operate.1} parent=51 // loop_body
                %v1593 = vld [vmem:[%s1591] sm:$0xff]
                %1594 = vst [vmem:[%s1592] sm:$0xff] %v1593
                %v1595 = vld [vmem:[%s1591 + $0x8] sm:$0xff]
                %1596 = vst [vmem:[%s1592 + $0x8] sm:$0xff] %v1595
                %v1597 = vld [vmem:[%s1591 + $0x10] sm:$0xff]
                %1598 = vst [vmem:[%s1592 + $0x10] sm:$0xff] %v1597
                %v1599 = vld [vmem:[%s1591 + $0x18] sm:$0xff]
                %1600 = vst [vmem:[%s1592 + $0x18] sm:$0xff] %v1599
                %v1601 = vld [vmem:[%s1591 + $0x20] sm:$0xff]
                %1602 = vst [vmem:[%s1592 + $0x20] sm:$0xff] %v1601
                %v1603 = vld [vmem:[%s1591 + $0x28] sm:$0xff]
                %1604 = vst [vmem:[%s1592 + $0x28] sm:$0xff] %v1603
                %v1605 = vld [vmem:[%s1591 + $0x30] sm:$0xff]
                %1606 = vst [vmem:[%s1592 + $0x60] sm:$0xff] %v1605
                %v1607 = vld [vmem:[%s1591 + $0x38] sm:$0xff]
                %1608 = vst [vmem:[%s1592 + $0x68] sm:$0xff] %v1607
                %v1609 = vld [vmem:[%s1591 + $0x40] sm:$0xff]
                %1610 = vst [vmem:[%s1592 + $0x70] sm:$0xff] %v1609
                %v1611 = vld [vmem:[%s1591 + $0x48] sm:$0xff]
                %1612 = vst [vmem:[%s1592 + $0x78] sm:$0xff] %v1611
                %v1613 = vld [vmem:[%s1591 + $0x50] sm:$0xff]
                %1614 = vst [vmem:[%s1592 + $0x80] sm:$0xff] %v1613
                %v1615 = vld [vmem:[%s1591 + $0x58] sm:$0xff]
                %1616 = vst [vmem:[%s1592 + $0x88] sm:$0xff] %v1615
                %v1617 = vld [vmem:[%s1591 + $0x60] sm:$0xff]
                %1618 = vst [vmem:[%s1592 + $0xc0] sm:$0xff] %v1617
                %v1619 = vld [vmem:[%s1591 + $0x68] sm:$0xff]
                %1620 = vst [vmem:[%s1592 + $0xc8] sm:$0xff] %v1619
                %v1621 = vld [vmem:[%s1591 + $0x70] sm:$0xff]
                %1622 = vst [vmem:[%s1592 + $0xd0] sm:$0xff] %v1621
                %v1623 = vld [vmem:[%s1591 + $0x78] sm:$0xff]
                %1624 = vst [vmem:[%s1592 + $0xd8] sm:$0xff] %v1623
                %v1625 = vld [vmem:[%s1591 + $0x80] sm:$0xff]
                %1626 = vst [vmem:[%s1592 + $0xe0] sm:$0xff] %v1625
                %v1627 = vld [vmem:[%s1591 + $0x88] sm:$0xff]
                %1628 = vst [vmem:[%s1592 + $0xe8] sm:$0xff] %v1627
                %v1629 = vld [vmem:[%s1591 + $0x90] sm:$0xff]
                %1630 = vst [vmem:[%s1592 + $0x120] sm:$0xff] %v1629
                %v1631 = vld [vmem:[%s1591 + $0x98] sm:$0xff]
                %1632 = vst [vmem:[%s1592 + $0x128] sm:$0xff] %v1631
                %v1633 = vld [vmem:[%s1591 + $0xa0] sm:$0xff]
                %1634 = vst [vmem:[%s1592 + $0x130] sm:$0xff] %v1633
                %v1635 = vld [vmem:[%s1591 + $0xa8] sm:$0xff]
                %1636 = vst [vmem:[%s1592 + $0x138] sm:$0xff] %v1635
                %v1637 = vld [vmem:[%s1591 + $0xb0] sm:$0xff]
                %1638 = vst [vmem:[%s1592 + $0x140] sm:$0xff] %v1637
                %v1639 = vld [vmem:[%s1591 + $0xb8] sm:$0xff]
                %1640 = vst [vmem:[%s1592 + $0x148] sm:$0xff] %v1639
                %v1641 = vld [vmem:[%s1591 + $0xc0] sm:$0xff]
                %1642 = vst [vmem:[%s1592 + $0x180] sm:$0xff] %v1641
                %v1643 = vld [vmem:[%s1591 + $0xc8] sm:$0xff]
                %1644 = vst [vmem:[%s1592 + $0x188] sm:$0xff] %v1643
                %v1645 = vld [vmem:[%s1591 + $0xd0] sm:$0xff]
                %1646 = vst [vmem:[%s1592 + $0x190] sm:$0xff] %v1645
                %v1647 = vld [vmem:[%s1591 + $0xd8] sm:$0xff]
                %1648 = vst [vmem:[%s1592 + $0x198] sm:$0xff] %v1647
                %v1649 = vld [vmem:[%s1591 + $0xe0] sm:$0xff]
                %1650 = vst [vmem:[%s1592 + $0x1a0] sm:$0xff] %v1649
                %v1651 = vld [vmem:[%s1591 + $0xe8] sm:$0xff]
                %1652 = vst [vmem:[%s1592 + $0x1a8] sm:$0xff] %v1651
                %v1653 = vld [vmem:[%s1591 + $0xf0] sm:$0xff]
                %1654 = vst [vmem:[%s1592 + $0x1e0] sm:$0xff] %v1653
                %v1655 = vld [vmem:[%s1591 + $0xf8] sm:$0xff]
                %1656 = vst [vmem:[%s1592 + $0x1e8] sm:$0xff] %v1655
                %v1657 = vld [vmem:[%s1591 + $0x100] sm:$0xff]
                %1658 = vst [vmem:[%s1592 + $0x1f0] sm:$0xff] %v1657
                %v1659 = vld [vmem:[%s1591 + $0x108] sm:$0xff]
                %1660 = vst [vmem:[%s1592 + $0x1f8] sm:$0xff] %v1659
                %v1661 = vld [vmem:[%s1591 + $0x110] sm:$0xff]
                %1662 = vst [vmem:[%s1592 + $0x200] sm:$0xff] %v1661
                %v1663 = vld [vmem:[%s1591 + $0x118] sm:$0xff]
                %1664 = vst [vmem:[%s1592 + $0x208] sm:$0xff] %v1663
                %v1665 = vld [vmem:[%s1591 + $0x120] sm:$0xff]
                %1666 = vst [vmem:[%s1592 + $0x240] sm:$0xff] %v1665
                %v1667 = vld [vmem:[%s1591 + $0x128] sm:$0xff]
                %1668 = vst [vmem:[%s1592 + $0x248] sm:$0xff] %v1667
                %v1669 = vld [vmem:[%s1591 + $0x130] sm:$0xff]
                %1670 = vst [vmem:[%s1592 + $0x250] sm:$0xff] %v1669
                %v1671 = vld [vmem:[%s1591 + $0x138] sm:$0xff]
                %1672 = vst [vmem:[%s1592 + $0x258] sm:$0xff] %v1671
                %v1673 = vld [vmem:[%s1591 + $0x140] sm:$0xff]
                %1674 = vst [vmem:[%s1592 + $0x260] sm:$0xff] %v1673
                %v1675 = vld [vmem:[%s1591 + $0x148] sm:$0xff]
                %1676 = vst [vmem:[%s1592 + $0x268] sm:$0xff] %v1675
                %v1677 = vld [vmem:[%s1591 + $0x150] sm:$0xff]
                %1678 = vst [vmem:[%s1592 + $0x2a0] sm:$0xff] %v1677
                %v1679 = vld [vmem:[%s1591 + $0x158] sm:$0xff]
                %1680 = vst [vmem:[%s1592 + $0x2a8] sm:$0xff] %v1679
                %v1681 = vld [vmem:[%s1591 + $0x160] sm:$0xff]
                %1682 = vst [vmem:[%s1592 + $0x2b0] sm:$0xff] %v1681
                %v1683 = vld [vmem:[%s1591 + $0x168] sm:$0xff]
                %1684 = vst [vmem:[%s1592 + $0x2b8] sm:$0xff] %v1683
                %v1685 = vld [vmem:[%s1591 + $0x170] sm:$0xff]
                %1686 = vst [vmem:[%s1592 + $0x2c0] sm:$0xff] %v1685
                %v1687 = vld [vmem:[%s1591 + $0x178] sm:$0xff]
                %1688 = vst [vmem:[%s1592 + $0x2c8] sm:$0xff] %v1687
              $region57: #{graph_operate.1} parent=51 // loop_footer
                %s1590 = sadd.s32 1, %s1586
              $region58: #{graph_operate.1} parent=51 // loop_footer_branch
                %1585 = sbr.rel target = $region54
              $region59: #{graph_operate.1} parent=51 // loop_exit
                _
            $region52: #{graph_operate.1} parent=43 // pred_fallthru
              _
          $region44: #{graph_operate.1} parent=39 // pred_fallthru
            _
          %1797 = vnop
        $region40: #{graph_operate.1} parent=35 // pred_fallthru
          _
      $region36: #{graph_operate.1} parent=5 // pred_fallthru
        _
      %p1798 = scmp.le.s32.totalorder 2, %s10
      // Predicated region
      $region75: #{graph_operate.1} parent=5 // pred_check
        %p1799 = pneg %p1798
      $region76: #{graph_operate.1} parent=5 // pred_check_branch
        %1801 = sbr.rel (%p1799) target = $region78
      $region77: #{graph_operate.1} parent=5 // pred_region
        %s1802 = ssub.s32 %s10, 2
        // Predicated region
        $region79: #{graph_operate.1} parent=77 // pred_check
          %p1803 = pneg %p138
        $region80: #{graph_operate.1} parent=77 // pred_check_branch
          %1805 = sbr.rel (%p1803) target = $region82
        $region81: #{graph_operate.1} parent=77 // pred_region
          %s1806 = sand.u32 %s123, 1
          %s1807 = sand.u32 %s123, 1
          %s1808 = smul.addr %s1807, 384
          %s1809 = scalar_lea.vmem [#allocation2], %s1808
        $region82: #{graph_operate.1} parent=77 // pred_fallthru
          _
      $region78: #{graph_operate.1} parent=5 // pred_fallthru
        _
    $region6: #{graph_operate.1} parent=1 // loop_footer
      %s14 = sadd.s32 1, %s10
    $region7: #{graph_operate.1} parent=1 // loop_footer_branch
      %9 = sbr.rel target = $region3
    $region8: #{graph_operate.1} parent=1 // loop_exit
      _

</llo_original>
